<compile_context>
chip_gen: v5e
topology: v5e:2x2
jax: 0.10.0
libtpu: 0.0.40
codegen_flags: <defaults>
</compile_context>

<pallas_src>
import functools

import jax
import jax.numpy as jnp
from jax.experimental import pallas as pl
from jax.experimental.pallas import tpu as pltpu

IN_CHANNELS = 7
HIDDEN = 64
HEADS = 2
NUM_CLASSES = 4

TILE_N = 128          # destination-row tile (grid axis, sharded across cores)
VA = 128              # per-head value width: [W_h x (64) | 1.0 | zero pad]
DEN_COL = HIDDEN      # column carrying the fused softmax denominator
OUT_PAD = 128         # classifier logits padded 4 -> 128 (lane-dense store)
NEG_INF = -1e30       # large-negative mask value (bf16 representable)


def _softmax_dtype():
    """bf16 elementwise softmax path on v6e/v7x (bf16 VPU/EUP); f32 elsewhere."""
    try:
        kind = jax.devices()[0].device_kind.lower()
    except Exception:
        return jnp.float32
    if "v6" in kind or "v7" in kind or "7x" in kind:
        return jnp.bfloat16
    return jnp.float32


# ----------------------------------------------------------------------------
# Kernels
# ----------------------------------------------------------------------------
def _gat_heads(adj_ref, vaug_ref, asrc_ref, adst_ref, sm_dtype):
    """Masked multi-head GAT attention + aggregation for one destination tile.

    adj_ref : (TILE, N)  int8   adj[dst, src] != 0 for every edge src -> dst
    vaug_ref: (H, N, VA) bf16   per-head [W_h x | 1 | 0] value matrix
    asrc_ref: (H, 1, N)  f32    per-head source attention scalar (lane-major)
    adst_ref: (TILE, H)  f32    per-head destination attention scalar
    returns : list of H (TILE, HIDDEN) f32 softmax-normalized aggregations
    """
    mask = adj_ref[...] != 0
    adst = adst_ref[...].astype(sm_dtype)
    neg = jnp.asarray(NEG_INF, sm_dtype)
    zero = jnp.asarray(0.0, sm_dtype)
    slope = jnp.asarray(0.2, sm_dtype)

    outs = []
    for hd in range(HEADS):
        a_src = asrc_ref[hd].astype(sm_dtype)            # (1, N)
        a_dst = adst[:, hd:hd + 1]                       # (TILE, 1)
        e = a_dst + a_src                                # (TILE, N)
        e = jnp.maximum(e, slope * e)                    # leaky_relu(0.2)
        e = jnp.where(mask, e, neg)                      # mask non-edges
        # Clamp the row max at 0 so fully-masked (isolated / padded) rows give
        # exp(-1e30) == 0 exactly -> aggregation 0 (+bias), matching PyG.
        m = jnp.maximum(jnp.max(e, axis=-1, keepdims=True), zero)
        p = jnp.exp(e - m).astype(jnp.bfloat16)          # masked entries -> 0
        # One MXU pass gives numerator (cols :64) and denominator (col 64).
        agg = jnp.dot(p, vaug_ref[hd], preferred_element_type=jnp.float32)
        den = agg[:, DEN_COL:DEN_COL + 1]
        inv = pl.reciprocal(jnp.where(den > 0, den, 1.0), approx=True)
        outs.append(agg[:, :HIDDEN] * inv)
    return outs


def gat1_kernel(adj_ref, vaug_ref, asrc_ref, adst_ref, b_ref, out_ref, *,
                sm_dtype):
    """GAT layer 1 (concat heads) + bias + ReLU for one destination-row tile."""
    outs = _gat_heads(adj_ref, vaug_ref, asrc_ref, adst_ref, sm_dtype)
    b = b_ref[...]                                        # (1, H*HIDDEN)
    for hd in range(HEADS):
        o = outs[hd] + b[:, hd * HIDDEN:(hd + 1) * HIDDEN]
        o = jnp.maximum(o, 0.0)                           # ReLU from forward()
        out_ref[:, hd * HIDDEN:(hd + 1) * HIDDEN] = o.astype(out_ref.dtype)


def gat2_cls_kernel(adj_ref, vaug_ref, asrc_ref, adst_ref, b_ref,
                    cw1_ref, cb1_ref, cw2_ref, cb2_ref, out_ref, *, sm_dtype):
    """GAT layer 2 (mean heads) + bias, then Linear-ReLU-Linear classifier."""
    outs = _gat_heads(adj_ref, vaug_ref, asrc_ref, adst_ref, sm_dtype)
    acc = outs[0]
    for o in outs[1:]:
        acc = acc + o
    h = acc * jnp.float32(1.0 / HEADS) + b_ref[...]       # (TILE, HIDDEN)
    c = jnp.dot(h.astype(jnp.bfloat16), cw1_ref[...],
                preferred_element_type=jnp.float32) + cb1_ref[...]
    c = jnp.maximum(c, 0.0)
    out_ref[...] = (jnp.dot(c.astype(jnp.bfloat16), cw2_ref[...],
                            preferred_element_type=jnp.float32) + cb2_ref[...])


# ----------------------------------------------------------------------------
# Host-side (XLA) per-node projections — computed once, not once per row tile.
# ----------------------------------------------------------------------------
def _head_projections(feats, w, att_src, att_dst):
    """Per-head value-aug matrix and attention scalars (src lane-major)."""
    n = feats.shape[0]
    vaug, asrc, adst = [], [], []
    for hd in range(HEADS):
        w_h = w[:, hd * HIDDEN:(hd + 1) * HIDDEN]                     # (in, 64)
        f_h = jnp.dot(feats, w_h, preferred_element_type=jnp.float32)  # (N, 64)
        a_src = f_h @ att_src[:, hd:hd + 1]                           # (N, 1)
        a_dst = f_h @ att_dst[:, hd:hd + 1]                           # (N, 1)
        v = (jnp.zeros((n, VA), jnp.float32)
             .at[:, :HIDDEN].set(f_h).at[:, DEN_COL].set(1.0))
        vaug.append(v)
        asrc.append(a_src[:, 0])
        adst.append(a_dst[:, 0])
    return (jnp.stack(vaug).astype(jnp.bfloat16),   # (H, N, VA) bf16
            jnp.stack(asrc)[:, None, :],            # (H, 1, N)  f32
            jnp.stack(adst, axis=1))                # (N, H)     f32


def _vmem_limit_bytes(n_pad):
    adj_tile = TILE_N * n_pad                   # int8 tile
    vaug = HEADS * n_pad * VA * 2               # bf16, resident
    temps = 6 * TILE_N * n_pad * 4              # softmax temporaries (f32 bound)
    est = 2 * adj_tile + 2 * vaug + temps + (4 << 20)
    return int(min(max(est, 32 << 20), 64 << 20))


def _cost_estimate(n_pad, extra_flops=0):
    n2 = n_pad * n_pad
    return pl.CostEstimate(
        flops=2 * HEADS * n2 * VA + 8 * HEADS * n2 + extra_flops,
        transcendentals=HEADS * n2,
        bytes_accessed=n2 + HEADS * n_pad * VA * 2 + n_pad * HEADS * HIDDEN * 2,
    )


# ----------------------------------------------------------------------------
# Parameter initialization (deterministic, synthetic; matches module shapes)
# ----------------------------------------------------------------------------
def init_params(key):
    ks = jax.random.split(key, 10)

    def glorot(k, shape):
        fan_in, fan_out = shape[0], shape[-1]
        scale = jnp.sqrt(6.0 / (fan_in + fan_out))
        return jax.random.uniform(k, shape, jnp.float32, -scale, scale)

    return {
        # GAT layer 1: in=7 -> hidden=64, heads=2, concat -> 128
        "w1": glorot(ks[0], (IN_CHANNELS, HEADS * HIDDEN)),
        "att_src1": glorot(ks[1], (HIDDEN, HEADS)),
        "att_dst1": glorot(ks[2], (HIDDEN, HEADS)),
        "bias1": jnp.zeros((1, HEADS * HIDDEN), jnp.float32),
        # GAT layer 2: in=128 -> hidden=64, heads=2, mean -> 64
        "w2": glorot(ks[3], (HEADS * HIDDEN, HEADS * HIDDEN)),
        "att_src2": glorot(ks[4], (HIDDEN, HEADS)),
        "att_dst2": glorot(ks[5], (HIDDEN, HEADS)),
        "bias2": jnp.zeros((1, HIDDEN), jnp.float32),
        # Classifier: Linear(64,64) -> ReLU -> Linear(64,4)
        "cw1": glorot(ks[6], (HIDDEN, HIDDEN)),
        "cb1": jnp.zeros((1, HIDDEN), jnp.float32),
        "cw2": glorot(ks[7], (HIDDEN, NUM_CLASSES)),
        "cb2": jnp.zeros((1, NUM_CLASSES), jnp.float32),
    }


# ----------------------------------------------------------------------------
# Forward pass
# ----------------------------------------------------------------------------
@jax.jit
def orbit_gnn_forward(params, x, edge_index):
    n = x.shape[0]
    n_pad = pl.cdiv(n, TILE_N) * TILE_N
    sm_dtype = _softmax_dtype()
    grid = (n_pad // TILE_N,)
    cparams = pltpu.CompilerParams(
        dimension_semantics=("parallel",),
        vmem_limit_bytes=_vmem_limit_bytes(n_pad))

    # Node features (zero-padded rows) and int8 adjacency adj[dst, src].
    x_p = jnp.zeros((n_pad, IN_CHANNELS), jnp.float32).at[:n].set(x)
    src, dst = edge_index[0], edge_index[1]
    adj = jnp.zeros((n_pad, n_pad), jnp.int8).at[dst, src].set(1)

    adj_spec = pl.BlockSpec((TILE_N, n_pad), lambda i: (i, 0))
    vaug_spec = pl.BlockSpec((HEADS, n_pad, VA), lambda i: (0, 0, 0))
    asrc_spec = pl.BlockSpec((HEADS, 1, n_pad), lambda i: (0, 0, 0))
    adst_spec = pl.BlockSpec((TILE_N, HEADS), lambda i: (i, 0))

    def row_spec(width):
        return pl.BlockSpec((TILE_N, width), lambda i: (i, 0))

    def full_spec(*shape):
        nd = len(shape)
        return pl.BlockSpec(shape, lambda i, nd=nd: (0,) * nd)

    # ---- GAT layer 1 (row-tiled, parallel grid) -> relu(h1) in bf16 --------
    vaug1, asrc1, adst1 = _head_projections(
        x_p, params["w1"], params["att_src1"], params["att_dst1"])
    h1 = pl.pallas_call(
        functools.partial(gat1_kernel, sm_dtype=sm_dtype),
        out_shape=jax.ShapeDtypeStruct((n_pad, HEADS * HIDDEN), jnp.bfloat16),
        grid=grid,
        in_specs=[adj_spec, vaug_spec, asrc_spec, adst_spec,
                  full_spec(1, HEADS * HIDDEN)],
        out_specs=row_spec(HEADS * HIDDEN),
        compiler_params=cparams,
        cost_estimate=_cost_estimate(n_pad),
    )(adj, vaug1, asrc1, adst1, params["bias1"])

    # ---- GAT layer 2 projections from h1 (once, in XLA) --------------------
    vaug2, asrc2, adst2 = _head_projections(
        h1, params["w2"].astype(jnp.bfloat16),
        params["att_src2"], params["att_dst2"])

    # Classifier weights (logits padded 4 -> 128 for a lane-dense store).
    cw1 = params["cw1"].astype(jnp.bfloat16)
    cw2 = (jnp.zeros((HIDDEN, OUT_PAD), jnp.float32)
           .at[:, :NUM_CLASSES].set(params["cw2"]).astype(jnp.bfloat16))
    cb2 = jnp.zeros((1, OUT_PAD), jnp.float32).at[:, :NUM_CLASSES].set(
        params["cb2"])

    mlp_flops = 2 * n_pad * HIDDEN * (HIDDEN + OUT_PAD)
    out_pad = pl.pallas_call(
        functools.partial(gat2_cls_kernel, sm_dtype=sm_dtype),
        out_shape=jax.ShapeDtypeStruct((n_pad, OUT_PAD), jnp.float32),
        grid=grid,
        in_specs=[adj_spec, vaug_spec, asrc_spec, adst_spec,
                  full_spec(1, HIDDEN),            # bias2
                  full_spec(HIDDEN, HIDDEN),       # cw1
                  full_spec(1, HIDDEN),            # cb1
                  full_spec(HIDDEN, OUT_PAD),      # cw2
                  full_spec(1, OUT_PAD)],          # cb2
        out_specs=row_spec(OUT_PAD),
        compiler_params=cparams,
        cost_estimate=_cost_estimate(n_pad, mlp_flops),
    )(adj, vaug2, asrc2, adst2, params["bias2"], cw1, params["cb1"], cw2, cb2)

    return out_pad[:n, :NUM_CLASSES]


if __name__ == "__main__":
    key = jax.random.PRNGKey(0)
    k_param, k_x = jax.random.split(key)

    N = 16  # number of nodes (satellites)
    params = init_params(k_param)
    x = jax.random.normal(k_x, (N, IN_CHANNELS), jnp.float32)

    # Deterministic synthetic edge set: each node i sends to (i+1)%N and
    # (i+3)%N, so every node has at least one incoming edge.
    srcs, dsts = [], []
    for i in range(N):
        for off in (1, 3):
            srcs.append(i)
            dsts.append((i + off) % N)
    edge_index = jnp.array([srcs, dsts], dtype=jnp.int32)  # (2, E)

    out = orbit_gnn_forward(params, x, edge_index)
    jax.block_until_ready(out)
    assert out.shape == (N, NUM_CLASSES)
    assert bool(jnp.all(jnp.isfinite(out)))
    print("KERNEL_OK")
</pallas_src>

<mosaic_0001>
module attributes {stable_mosaic.version = 11 : i64} {
  func.func @gat1_kernel(%arg0: i32, %arg1: memref<128x128xi8, #tpu.memory_space<vmem>>, %arg2: memref<2x128x128xbf16, #tpu.memory_space<vmem>>, %arg3: memref<2x1x128xf32, #tpu.memory_space<vmem>>, %arg4: memref<128x2xf32, #tpu.memory_space<vmem>>, %arg5: memref<1x128xf32, #tpu.memory_space<vmem>>, %arg6: memref<128x128xbf16, #tpu.memory_space<vmem>>) attributes {dimension_semantics = [#tpu.dimension_semantics<parallel>], iteration_bounds = array<i64: 1>, scalar_prefetch = 0 : i64, scratch_operands = 0 : i64, tpu.core_type = #tpu.core_type<tc>, window_params = [{transform_indices = @transform_0, window_bounds = array<i64: 128, 128>}, {pipeline_mode = #tpu.pipeline_mode<synchronous>, transform_indices = @transform_1, window_bounds = array<i64: 2, 128, 128>}, {pipeline_mode = #tpu.pipeline_mode<synchronous>, transform_indices = @transform_2, window_bounds = array<i64: 2, 1, 128>}, {transform_indices = @transform_3, window_bounds = array<i64: 128, 2>}, {pipeline_mode = #tpu.pipeline_mode<synchronous>, transform_indices = @transform_4, window_bounds = array<i64: 1, 128>}, {transform_indices = @transform_5, window_bounds = array<i64: 128, 128>}]} {
    %c0 = arith.constant 0 : index
    %c0_0 = arith.constant 0 : index
    %0 = vector.load %arg1[%c0, %c0_0] : memref<128x128xi8, #tpu.memory_space<vmem>>, vector<128x128xi8>
    %c0_i8 = arith.constant 0 : i8
    %1 = vector.broadcast %c0_i8 : i8 to vector<128x128xi8>
    %2 = arith.cmpi ne, %0, %1 : vector<128x128xi8>
    %c0_1 = arith.constant 0 : index
    %c0_2 = arith.constant 0 : index
    %3 = vector.load %arg4[%c0_1, %c0_2] : memref<128x2xf32, #tpu.memory_space<vmem>>, vector<128x2xf32>
    %c0_3 = arith.constant 0 : index
    %c0_4 = arith.constant 0 : index
    %c0_5 = arith.constant 0 : index
    %4 = vector.load %arg3[%c0_3, %c0_4, %c0_5] : memref<2x1x128xf32, #tpu.memory_space<vmem>>, vector<1x1x128xf32>
    %5 = vector.shape_cast %4 : vector<1x1x128xf32> to vector<1x128xf32>
    %6 = vector.extract_strided_slice %3 {offsets = [0, 0], sizes = [128, 1], strides = [1, 1]} : vector<128x2xf32> to vector<128x1xf32>
    %7 = vector.broadcast %6 : vector<128x1xf32> to vector<128x128xf32>
    %8 = vector.broadcast %5 : vector<1x128xf32> to vector<128x128xf32>
    %9 = arith.addf %7, %8 : vector<128x128xf32>
    %cst = arith.constant 2.000000e-01 : f32
    %10 = vector.broadcast %cst : f32 to vector<128x128xf32>
    %11 = arith.mulf %10, %9 : vector<128x128xf32>
    %12 = arith.maximumf %9, %11 : vector<128x128xf32>
    %cst_6 = arith.constant -1.000000e+30 : f32
    %13 = vector.broadcast %cst_6 : f32 to vector<128x128xf32>
    %14 = arith.select %2, %12, %13 : vector<128x128xi1>, vector<128x128xf32>
    %cst_7 = arith.constant dense<0xFF800000> : vector<128xf32>
    %15 = vector.multi_reduction <maximumf>, %14, %cst_7 [1] : vector<128x128xf32> to vector<128xf32>
    %16 = vector.shape_cast %15 : vector<128xf32> to vector<128x1xf32>
    %cst_8 = arith.constant 0.000000e+00 : f32
    %17 = vector.broadcast %cst_8 : f32 to vector<128x1xf32>
    %18 = arith.maximumf %16, %17 : vector<128x1xf32>
    %19 = vector.broadcast %18 : vector<128x1xf32> to vector<128x128xf32>
    %20 = arith.subf %14, %19 : vector<128x128xf32>
    %21 = math.exp %20 : vector<128x128xf32>
    %22 = arith.truncf %21 : vector<128x128xf32> to vector<128x128xbf16>
    %c0_9 = arith.constant 0 : index
    %c0_10 = arith.constant 0 : index
    %c0_11 = arith.constant 0 : index
    %23 = vector.load %arg2[%c0_9, %c0_10, %c0_11] : memref<2x128x128xbf16, #tpu.memory_space<vmem>>, vector<1x128x128xbf16>
    %24 = vector.shape_cast %23 : vector<1x128x128xbf16> to vector<128x128xbf16>
    %cst_12 = arith.constant dense<0.000000e+00> : vector<128x128xf32>
    %25 = tpu.matmul %22, %24, %cst_12 {dimension_numbers = #tpu.dot_dimension_numbers<[1], [0], [0], [1], [0, 0, 1, 1], [], []>} : vector<128x128xbf16>, vector<128x128xbf16>, vector<128x128xf32> -> vector<128x128xf32>
    %26 = vector.extract_strided_slice %25 {offsets = [0, 64], sizes = [128, 1], strides = [1, 1]} : vector<128x128xf32> to vector<128x1xf32>
    %cst_13 = arith.constant 0.000000e+00 : f32
    %27 = vector.broadcast %cst_13 : f32 to vector<128x1xf32>
    %28 = arith.cmpf ogt, %26, %27 : vector<128x1xf32>
    %cst_14 = arith.constant 1.000000e+00 : f32
    %29 = vector.broadcast %cst_14 : f32 to vector<128x1xf32>
    %30 = arith.select %28, %26, %29 : vector<128x1xi1>, vector<128x1xf32>
    %31 = tpu.reciprocal %30 {approx = true} : vector<128x1xf32> -> vector<128x1xf32>
    %32 = vector.extract_strided_slice %25 {offsets = [0, 0], sizes = [128, 64], strides = [1, 1]} : vector<128x128xf32> to vector<128x64xf32>
    %33 = vector.broadcast %31 : vector<128x1xf32> to vector<128x64xf32>
    %34 = arith.mulf %32, %33 : vector<128x64xf32>
    %c1 = arith.constant 1 : index
    %c0_15 = arith.constant 0 : index
    %c0_16 = arith.constant 0 : index
    %35 = vector.load %arg3[%c1, %c0_15, %c0_16] : memref<2x1x128xf32, #tpu.memory_space<vmem>>, vector<1x1x128xf32>
    %36 = vector.shape_cast %35 : vector<1x1x128xf32> to vector<1x128xf32>
    %37 = vector.extract_strided_slice %3 {offsets = [0, 1], sizes = [128, 1], strides = [1, 1]} : vector<128x2xf32> to vector<128x1xf32>
    %38 = vector.broadcast %37 : vector<128x1xf32> to vector<128x128xf32>
    %39 = vector.broadcast %36 : vector<1x128xf32> to vector<128x128xf32>
    %40 = arith.addf %38, %39 : vector<128x128xf32>
    %cst_17 = arith.constant 2.000000e-01 : f32
    %41 = vector.broadcast %cst_17 : f32 to vector<128x128xf32>
    %42 = arith.mulf %41, %40 : vector<128x128xf32>
    %43 = arith.maximumf %40, %42 : vector<128x128xf32>
    %cst_18 = arith.constant -1.000000e+30 : f32
    %44 = vector.broadcast %cst_18 : f32 to vector<128x128xf32>
    %45 = arith.select %2, %43, %44 : vector<128x128xi1>, vector<128x128xf32>
    %cst_19 = arith.constant dense<0xFF800000> : vector<128xf32>
    %46 = vector.multi_reduction <maximumf>, %45, %cst_19 [1] : vector<128x128xf32> to vector<128xf32>
    %47 = vector.shape_cast %46 : vector<128xf32> to vector<128x1xf32>
    %cst_20 = arith.constant 0.000000e+00 : f32
    %48 = vector.broadcast %cst_20 : f32 to vector<128x1xf32>
    %49 = arith.maximumf %47, %48 : vector<128x1xf32>
    %50 = vector.broadcast %49 : vector<128x1xf32> to vector<128x128xf32>
    %51 = arith.subf %45, %50 : vector<128x128xf32>
    %52 = math.exp %51 : vector<128x128xf32>
    %53 = arith.truncf %52 : vector<128x128xf32> to vector<128x128xbf16>
    %c1_21 = arith.constant 1 : index
    %c0_22 = arith.constant 0 : index
    %c0_23 = arith.constant 0 : index
    %54 = vector.load %arg2[%c1_21, %c0_22, %c0_23] : memref<2x128x128xbf16, #tpu.memory_space<vmem>>, vector<1x128x128xbf16>
    %55 = vector.shape_cast %54 : vector<1x128x128xbf16> to vector<128x128xbf16>
    %cst_24 = arith.constant dense<0.000000e+00> : vector<128x128xf32>
    %56 = tpu.matmul %53, %55, %cst_24 {dimension_numbers = #tpu.dot_dimension_numbers<[1], [0], [0], [1], [0, 0, 1, 1], [], []>} : vector<128x128xbf16>, vector<128x128xbf16>, vector<128x128xf32> -> vector<128x128xf32>
    %57 = vector.extract_strided_slice %56 {offsets = [0, 64], sizes = [128, 1], strides = [1, 1]} : vector<128x128xf32> to vector<128x1xf32>
    %cst_25 = arith.constant 0.000000e+00 : f32
    %58 = vector.broadcast %cst_25 : f32 to vector<128x1xf32>
    %59 = arith.cmpf ogt, %57, %58 : vector<128x1xf32>
    %cst_26 = arith.constant 1.000000e+00 : f32
    %60 = vector.broadcast %cst_26 : f32 to vector<128x1xf32>
    %61 = arith.select %59, %57, %60 : vector<128x1xi1>, vector<128x1xf32>
    %62 = tpu.reciprocal %61 {approx = true} : vector<128x1xf32> -> vector<128x1xf32>
    %63 = vector.extract_strided_slice %56 {offsets = [0, 0], sizes = [128, 64], strides = [1, 1]} : vector<128x128xf32> to vector<128x64xf32>
    %64 = vector.broadcast %62 : vector<128x1xf32> to vector<128x64xf32>
    %65 = arith.mulf %63, %64 : vector<128x64xf32>
    %c0_27 = arith.constant 0 : index
    %c0_28 = arith.constant 0 : index
    %66 = vector.load %arg5[%c0_27, %c0_28] : memref<1x128xf32, #tpu.memory_space<vmem>>, vector<1x128xf32>
    %67 = vector.extract_strided_slice %66 {offsets = [0, 0], sizes = [1, 64], strides = [1, 1]} : vector<1x128xf32> to vector<1x64xf32>
    %68 = vector.broadcast %67 : vector<1x64xf32> to vector<128x64xf32>
    %69 = arith.addf %34, %68 : vector<128x64xf32>
    %cst_29 = arith.constant 0.000000e+00 : f32
    %70 = vector.broadcast %cst_29 : f32 to vector<128x64xf32>
    %71 = arith.maximumf %69, %70 : vector<128x64xf32>
    %72 = arith.truncf %71 : vector<128x64xf32> to vector<128x64xbf16>
    %c0_30 = arith.constant 0 : index
    %c0_31 = arith.constant 0 : index
    %73 = vector.load %arg6[%c0_30, %c0_31] : memref<128x128xbf16, #tpu.memory_space<vmem>>, vector<128x64xbf16>
    tpu.vector_store %arg6[%c0_30, %c0_31], %72 {strides = array<i32>} : memref<128x128xbf16, #tpu.memory_space<vmem>>, vector<128x64xbf16>,
    %74 = vector.extract_strided_slice %66 {offsets = [0, 64], sizes = [1, 64], strides = [1, 1]} : vector<1x128xf32> to vector<1x64xf32>
    %75 = vector.broadcast %74 : vector<1x64xf32> to vector<128x64xf32>
    %76 = arith.addf %65, %75 : vector<128x64xf32>
    %cst_32 = arith.constant 0.000000e+00 : f32
    %77 = vector.broadcast %cst_32 : f32 to vector<128x64xf32>
    %78 = arith.maximumf %76, %77 : vector<128x64xf32>
    %79 = arith.truncf %78 : vector<128x64xf32> to vector<128x64xbf16>
    %c0_33 = arith.constant 0 : index
    %c64 = arith.constant 64 : index
    %80 = vector.load %arg6[%c0_33, %c64] : memref<128x128xbf16, #tpu.memory_space<vmem>>, vector<128x64xbf16>
    tpu.vector_store %arg6[%c0_33, %c64], %79 {strides = array<i32>} : memref<128x128xbf16, #tpu.memory_space<vmem>>, vector<128x64xbf16>,
    return
  }
  func.func @transform_0(%arg0: i32) -> (i32, i32) {
    %c0_i32 = arith.constant 0 : i32
    %c0_i32_0 = arith.constant 0 : i32
    return %arg0, %c0_i32 : i32, i32
  }
  func.func @transform_1(%arg0: i32) -> (i32, i32, i32) {
    %c0_i32 = arith.constant 0 : i32
    %c0_i32_0 = arith.constant 0 : i32
    %c0_i32_1 = arith.constant 0 : i32
    %c0_i32_2 = arith.constant 0 : i32
    return %c0_i32, %c0_i32_0, %c0_i32_1 : i32, i32, i32
  }
  func.func @transform_2(%arg0: i32) -> (i32, i32, i32) {
    %c0_i32 = arith.constant 0 : i32
    %c0_i32_0 = arith.constant 0 : i32
    %c0_i32_1 = arith.constant 0 : i32
    %c0_i32_2 = arith.constant 0 : i32
    return %c0_i32, %c0_i32_0, %c0_i32_1 : i32, i32, i32
  }
  func.func @transform_3(%arg0: i32) -> (i32, i32) {
    %c0_i32 = arith.constant 0 : i32
    %c0_i32_0 = arith.constant 0 : i32
    return %arg0, %c0_i32 : i32, i32
  }
  func.func @transform_4(%arg0: i32) -> (i32, i32) {
    %c0_i32 = arith.constant 0 : i32
    %c0_i32_0 = arith.constant 0 : i32
    %c0_i32_1 = arith.constant 0 : i32
    return %c0_i32, %c0_i32_0 : i32, i32
  }
  func.func @transform_5(%arg0: i32) -> (i32, i32) {
    %c0_i32 = arith.constant 0 : i32
    %c0_i32_0 = arith.constant 0 : i32
    return %arg0, %c0_i32 : i32, i32
  }
}

module attributes {stable_mosaic.version = 11 : i64} {
  func.func @gat2_cls_kernel(%arg0: i32, %arg1: memref<128x128xi8, #tpu.memory_space<vmem>>, %arg2: memref<2x128x128xbf16, #tpu.memory_space<vmem>>, %arg3: memref<2x1x128xf32, #tpu.memory_space<vmem>>, %arg4: memref<128x2xf32, #tpu.memory_space<vmem>>, %arg5: memref<1x64xf32, #tpu.memory_space<vmem>>, %arg6: memref<64x64xbf16, #tpu.memory_space<vmem>>, %arg7: memref<1x64xf32, #tpu.memory_space<vmem>>, %arg8: memref<64x128xbf16, #tpu.memory_space<vmem>>, %arg9: memref<1x128xf32, #tpu.memory_space<vmem>>, %arg10: memref<128x128xf32, #tpu.memory_space<vmem>>) attributes {dimension_semantics = [#tpu.dimension_semantics<parallel>], iteration_bounds = array<i64: 1>, scalar_prefetch = 0 : i64, scratch_operands = 0 : i64, tpu.core_type = #tpu.core_type<tc>, window_params = [{transform_indices = @transform_0, window_bounds = array<i64: 128, 128>}, {pipeline_mode = #tpu.pipeline_mode<synchronous>, transform_indices = @transform_1, window_bounds = array<i64: 2, 128, 128>}, {pipeline_mode = #tpu.pipeline_mode<synchronous>, transform_indices = @transform_2, window_bounds = array<i64: 2, 1, 128>}, {transform_indices = @transform_3, window_bounds = array<i64: 128, 2>}, {pipeline_mode = #tpu.pipeline_mode<synchronous>, transform_indices = @transform_4, window_bounds = array<i64: 1, 64>}, {pipeline_mode = #tpu.pipeline_mode<synchronous>, transform_indices = @transform_5, window_bounds = array<i64: 64, 64>}, {pipeline_mode = #tpu.pipeline_mode<synchronous>, transform_indices = @transform_6, window_bounds = array<i64: 1, 64>}, {pipeline_mode = #tpu.pipeline_mode<synchronous>, transform_indices = @transform_7, window_bounds = array<i64: 64, 128>}, {pipeline_mode = #tpu.pipeline_mode<synchronous>, transform_indices = @transform_8, window_bounds = array<i64: 1, 128>}, {transform_indices = @transform_9, window_bounds = array<i64: 128, 128>}]} {
    %c0 = arith.constant 0 : index
    %c0_0 = arith.constant 0 : index
    %0 = vector.load %arg1[%c0, %c0_0] : memref<128x128xi8, #tpu.memory_space<vmem>>, vector<128x128xi8>
    %c0_i8 = arith.constant 0 : i8
    %1 = vector.broadcast %c0_i8 : i8 to vector<128x128xi8>
    %2 = arith.cmpi ne, %0, %1 : vector<128x128xi8>
    %c0_1 = arith.constant 0 : index
    %c0_2 = arith.constant 0 : index
    %3 = vector.load %arg4[%c0_1, %c0_2] : memref<128x2xf32, #tpu.memory_space<vmem>>, vector<128x2xf32>
    %c0_3 = arith.constant 0 : index
    %c0_4 = arith.constant 0 : index
    %c0_5 = arith.constant 0 : index
    %4 = vector.load %arg3[%c0_3, %c0_4, %c0_5] : memref<2x1x128xf32, #tpu.memory_space<vmem>>, vector<1x1x128xf32>
    %5 = vector.shape_cast %4 : vector<1x1x128xf32> to vector<1x128xf32>
    %6 = vector.extract_strided_slice %3 {offsets = [0, 0], sizes = [128, 1], strides = [1, 1]} : vector<128x2xf32> to vector<128x1xf32>
    %7 = vector.broadcast %6 : vector<128x1xf32> to vector<128x128xf32>
    %8 = vector.broadcast %5 : vector<1x128xf32> to vector<128x128xf32>
    %9 = arith.addf %7, %8 : vector<128x128xf32>
    %cst = arith.constant 2.000000e-01 : f32
    %10 = vector.broadcast %cst : f32 to vector<128x128xf32>
    %11 = arith.mulf %10, %9 : vector<128x128xf32>
    %12 = arith.maximumf %9, %11 : vector<128x128xf32>
    %cst_6 = arith.constant -1.000000e+30 : f32
    %13 = vector.broadcast %cst_6 : f32 to vector<128x128xf32>
    %14 = arith.select %2, %12, %13 : vector<128x128xi1>, vector<128x128xf32>
    %cst_7 = arith.constant dense<0xFF800000> : vector<128xf32>
    %15 = vector.multi_reduction <maximumf>, %14, %cst_7 [1] : vector<128x128xf32> to vector<128xf32>
    %16 = vector.shape_cast %15 : vector<128xf32> to vector<128x1xf32>
    %cst_8 = arith.constant 0.000000e+00 : f32
    %17 = vector.broadcast %cst_8 : f32 to vector<128x1xf32>
    %18 = arith.maximumf %16, %17 : vector<128x1xf32>
    %19 = vector.broadcast %18 : vector<128x1xf32> to vector<128x128xf32>
    %20 = arith.subf %14, %19 : vector<128x128xf32>
    %21 = math.exp %20 : vector<128x128xf32>
    %22 = arith.truncf %21 : vector<128x128xf32> to vector<128x128xbf16>
    %c0_9 = arith.constant 0 : index
    %c0_10 = arith.constant 0 : index
    %c0_11 = arith.constant 0 : index
    %23 = vector.load %arg2[%c0_9, %c0_10, %c0_11] : memref<2x128x128xbf16, #tpu.memory_space<vmem>>, vector<1x128x128xbf16>
    %24 = vector.shape_cast %23 : vector<1x128x128xbf16> to vector<128x128xbf16>
    %cst_12 = arith.constant dense<0.000000e+00> : vector<128x128xf32>
    %25 = tpu.matmul %22, %24, %cst_12 {dimension_numbers = #tpu.dot_dimension_numbers<[1], [0], [0], [1], [0, 0, 1, 1], [], []>} : vector<128x128xbf16>, vector<128x128xbf16>, vector<128x128xf32> -> vector<128x128xf32>
    %26 = vector.extract_strided_slice %25 {offsets = [0, 64], sizes = [128, 1], strides = [1, 1]} : vector<128x128xf32> to vector<128x1xf32>
    %cst_13 = arith.constant 0.000000e+00 : f32
    %27 = vector.broadcast %cst_13 : f32 to vector<128x1xf32>
    %28 = arith.cmpf ogt, %26, %27 : vector<128x1xf32>
    %cst_14 = arith.constant 1.000000e+00 : f32
    %29 = vector.broadcast %cst_14 : f32 to vector<128x1xf32>
    %30 = arith.select %28, %26, %29 : vector<128x1xi1>, vector<128x1xf32>
    %31 = tpu.reciprocal %30 {approx = true} : vector<128x1xf32> -> vector<128x1xf32>
    %32 = vector.extract_strided_slice %25 {offsets = [0, 0], sizes = [128, 64], strides = [1, 1]} : vector<128x128xf32> to vector<128x64xf32>
    %33 = vector.broadcast %31 : vector<128x1xf32> to vector<128x64xf32>
    %34 = arith.mulf %32, %33 : vector<128x64xf32>
    %c1 = arith.constant 1 : index
    %c0_15 = arith.constant 0 : index
    %c0_16 = arith.constant 0 : index
    %35 = vector.load %arg3[%c1, %c0_15, %c0_16] : memref<2x1x128xf32, #tpu.memory_space<vmem>>, vector<1x1x128xf32>
    %36 = vector.shape_cast %35 : vector<1x1x128xf32> to vector<1x128xf32>
    %37 = vector.extract_strided_slice %3 {offsets = [0, 1], sizes = [128, 1], strides = [1, 1]} : vector<128x2xf32> to vector<128x1xf32>
    %38 = vector.broadcast %37 : vector<128x1xf32> to vector<128x128xf32>
    %39 = vector.broadcast %36 : vector<1x128xf32> to vector<128x128xf32>
    %40 = arith.addf %38, %39 : vector<128x128xf32>
    %cst_17 = arith.constant 2.000000e-01 : f32
    %41 = vector.broadcast %cst_17 : f32 to vector<128x128xf32>
    %42 = arith.mulf %41, %40 : vector<128x128xf32>
    %43 = arith.maximumf %40, %42 : vector<128x128xf32>
    %cst_18 = arith.constant -1.000000e+30 : f32
    %44 = vector.broadcast %cst_18 : f32 to vector<128x128xf32>
    %45 = arith.select %2, %43, %44 : vector<128x128xi1>, vector<128x128xf32>
    %cst_19 = arith.constant dense<0xFF800000> : vector<128xf32>
    %46 = vector.multi_reduction <maximumf>, %45, %cst_19 [1] : vector<128x128xf32> to vector<128xf32>
    %47 = vector.shape_cast %46 : vector<128xf32> to vector<128x1xf32>
    %cst_20 = arith.constant 0.000000e+00 : f32
    %48 = vector.broadcast %cst_20 : f32 to vector<128x1xf32>
    %49 = arith.maximumf %47, %48 : vector<128x1xf32>
    %50 = vector.broadcast %49 : vector<128x1xf32> to vector<128x128xf32>
    %51 = arith.subf %45, %50 : vector<128x128xf32>
    %52 = math.exp %51 : vector<128x128xf32>
    %53 = arith.truncf %52 : vector<128x128xf32> to vector<128x128xbf16>
    %c1_21 = arith.constant 1 : index
    %c0_22 = arith.constant 0 : index
    %c0_23 = arith.constant 0 : index
    %54 = vector.load %arg2[%c1_21, %c0_22, %c0_23] : memref<2x128x128xbf16, #tpu.memory_space<vmem>>, vector<1x128x128xbf16>
    %55 = vector.shape_cast %54 : vector<1x128x128xbf16> to vector<128x128xbf16>
    %cst_24 = arith.constant dense<0.000000e+00> : vector<128x128xf32>
    %56 = tpu.matmul %53, %55, %cst_24 {dimension_numbers = #tpu.dot_dimension_numbers<[1], [0], [0], [1], [0, 0, 1, 1], [], []>} : vector<128x128xbf16>, vector<128x128xbf16>, vector<128x128xf32> -> vector<128x128xf32>
    %57 = vector.extract_strided_slice %56 {offsets = [0, 64], sizes = [128, 1], strides = [1, 1]} : vector<128x128xf32> to vector<128x1xf32>
    %cst_25 = arith.constant 0.000000e+00 : f32
    %58 = vector.broadcast %cst_25 : f32 to vector<128x1xf32>
    %59 = arith.cmpf ogt, %57, %58 : vector<128x1xf32>
    %cst_26 = arith.constant 1.000000e+00 : f32
    %60 = vector.broadcast %cst_26 : f32 to vector<128x1xf32>
    %61 = arith.select %59, %57, %60 : vector<128x1xi1>, vector<128x1xf32>
    %62 = tpu.reciprocal %61 {approx = true} : vector<128x1xf32> -> vector<128x1xf32>
    %63 = vector.extract_strided_slice %56 {offsets = [0, 0], sizes = [128, 64], strides = [1, 1]} : vector<128x128xf32> to vector<128x64xf32>
    %64 = vector.broadcast %62 : vector<128x1xf32> to vector<128x64xf32>
    %65 = arith.mulf %63, %64 : vector<128x64xf32>
    %66 = arith.addf %34, %65 : vector<128x64xf32>
    %cst_27 = arith.constant 5.000000e-01 : f32
    %67 = vector.broadcast %cst_27 : f32 to vector<128x64xf32>
    %68 = arith.mulf %66, %67 : vector<128x64xf32>
    %c0_28 = arith.constant 0 : index
    %c0_29 = arith.constant 0 : index
    %69 = vector.load %arg5[%c0_28, %c0_29] : memref<1x64xf32, #tpu.memory_space<vmem>>, vector<1x64xf32>
    %70 = vector.broadcast %69 : vector<1x64xf32> to vector<128x64xf32>
    %71 = arith.addf %68, %70 : vector<128x64xf32>
    %72 = arith.truncf %71 : vector<128x64xf32> to vector<128x64xbf16>
    %c0_30 = arith.constant 0 : index
    %c0_31 = arith.constant 0 : index
    %73 = vector.load %arg6[%c0_30, %c0_31] : memref<64x64xbf16, #tpu.memory_space<vmem>>, vector<64x64xbf16>
    %cst_32 = arith.constant dense<0.000000e+00> : vector<128x64xf32>
    %74 = tpu.matmul %72, %73, %cst_32 {dimension_numbers = #tpu.dot_dimension_numbers<[1], [0], [0], [1], [0, 0, 1, 1], [], []>} : vector<128x64xbf16>, vector<64x64xbf16>, vector<128x64xf32> -> vector<128x64xf32>
    %c0_33 = arith.constant 0 : index
    %c0_34 = arith.constant 0 : index
    %75 = vector.load %arg7[%c0_33, %c0_34] : memref<1x64xf32, #tpu.memory_space<vmem>>, vector<1x64xf32>
    %76 = vector.broadcast %75 : vector<1x64xf32> to vector<128x64xf32>
    %77 = arith.addf %74, %76 : vector<128x64xf32>
    %cst_35 = arith.constant 0.000000e+00 : f32
    %78 = vector.broadcast %cst_35 : f32 to vector<128x64xf32>
    %79 = arith.maximumf %77, %78 : vector<128x64xf32>
    %80 = arith.truncf %79 : vector<128x64xf32> to vector<128x64xbf16>
    %c0_36 = arith.constant 0 : index
    %c0_37 = arith.constant 0 : index
    %81 = vector.load %arg8[%c0_36, %c0_37] : memref<64x128xbf16, #tpu.memory_space<vmem>>, vector<64x128xbf16>
    %cst_38 = arith.constant dense<0.000000e+00> : vector<128x128xf32>
    %82 = tpu.matmul %80, %81, %cst_38 {dimension_numbers = #tpu.dot_dimension_numbers<[1], [0], [0], [1], [0, 0, 1, 1], [], []>} : vector<128x64xbf16>, vector<64x128xbf16>, vector<128x128xf32> -> vector<128x128xf32>
    %c0_39 = arith.constant 0 : index
    %c0_40 = arith.constant 0 : index
    %83 = vector.load %arg9[%c0_39, %c0_40] : memref<1x128xf32, #tpu.memory_space<vmem>>, vector<1x128xf32>
    %84 = vector.broadcast %83 : vector<1x128xf32> to vector<128x128xf32>
    %85 = arith.addf %82, %84 : vector<128x128xf32>
    %c0_41 = arith.constant 0 : index
    %c0_42 = arith.constant 0 : index
    %86 = vector.load %arg10[%c0_41, %c0_42] : memref<128x128xf32, #tpu.memory_space<vmem>>, vector<128x128xf32>
    tpu.vector_store %arg10[%c0_41, %c0_42], %85 {strides = array<i32>} : memref<128x128xf32, #tpu.memory_space<vmem>>, vector<128x128xf32>,
    return
  }
  func.func @transform_0(%arg0: i32) -> (i32, i32) {
    %c0_i32 = arith.constant 0 : i32
    %c0_i32_0 = arith.constant 0 : i32
    return %arg0, %c0_i32 : i32, i32
  }
  func.func @transform_1(%arg0: i32) -> (i32, i32, i32) {
    %c0_i32 = arith.constant 0 : i32
    %c0_i32_0 = arith.constant 0 : i32
    %c0_i32_1 = arith.constant 0 : i32
    %c0_i32_2 = arith.constant 0 : i32
    return %c0_i32, %c0_i32_0, %c0_i32_1 : i32, i32, i32
  }
  func.func @transform_2(%arg0: i32) -> (i32, i32, i32) {
    %c0_i32 = arith.constant 0 : i32
    %c0_i32_0 = arith.constant 0 : i32
    %c0_i32_1 = arith.constant 0 : i32
    %c0_i32_2 = arith.constant 0 : i32
    return %c0_i32, %c0_i32_0, %c0_i32_1 : i32, i32, i32
  }
  func.func @transform_3(%arg0: i32) -> (i32, i32) {
    %c0_i32 = arith.constant 0 : i32
    %c0_i32_0 = arith.constant 0 : i32
    return %arg0, %c0_i32 : i32, i32
  }
  func.func @transform_4(%arg0: i32) -> (i32, i32) {
    %c0_i32 = arith.constant 0 : i32
    %c0_i32_0 = arith.constant 0 : i32
    %c0_i32_1 = arith.constant 0 : i32
    return %c0_i32, %c0_i32_0 : i32, i32
  }
  func.func @transform_5(%arg0: i32) -> (i32, i32) {
    %c0_i32 = arith.constant 0 : i32
    %c0_i32_0 = arith.constant 0 : i32
    %c0_i32_1 = arith.constant 0 : i32
    return %c0_i32, %c0_i32_0 : i32, i32
  }
  func.func @transform_6(%arg0: i32) -> (i32, i32) {
    %c0_i32 = arith.constant 0 : i32
    %c0_i32_0 = arith.constant 0 : i32
    %c0_i32_1 = arith.constant 0 : i32
    return %c0_i32, %c0_i32_0 : i32, i32
  }
  func.func @transform_7(%arg0: i32) -> (i32, i32) {
    %c0_i32 = arith.constant 0 : i32
    %c0_i32_0 = arith.constant 0 : i32
    %c0_i32_1 = arith.constant 0 : i32
    return %c0_i32, %c0_i32_0 : i32, i32
  }
  func.func @transform_8(%arg0: i32) -> (i32, i32) {
    %c0_i32 = arith.constant 0 : i32
    %c0_i32_0 = arith.constant 0 : i32
    %c0_i32_1 = arith.constant 0 : i32
    return %c0_i32, %c0_i32_0 : i32, i32
  }
  func.func @transform_9(%arg0: i32) -> (i32, i32) {
    %c0_i32 = arith.constant 0 : i32
    %c0_i32_0 = arith.constant 0 : i32
    return %arg0, %c0_i32 : i32, i32
  }
}

</mosaic_0001>

<llo_original>
// kernel: orbit_gnn_forward.2
$region0: #{orbit_gnn_forward.2}
  #allocation0 [shape = 'u32[]', space=smem, size = 0x4, offset = 0x4, fixed_abs, tag = 'smem constant byte address 0x4 - core index']
  #allocation1 [shape = 'u32[72,128]{1,0:T(1,128)}', space=vmem, size = 0x9000, scoped, tag = 'internal scratch']
  %s0 = inlined_call_operand.vmem [shape: s8[128,128], index: 0, kind: input, shape index: {}]
  %s1 = inlined_call_operand.vmem [shape: bf16[2,128,128], index: 1, kind: input, shape index: {}]
  %s2 = inlined_call_operand.vmem [shape: f32[2,1,128], index: 2, kind: input, shape index: {}]
  %s3 = inlined_call_operand.vmem [shape: f32[128,2], index: 3, kind: input, shape index: {}]
  %s4 = inlined_call_operand.vmem [shape: f32[1,128], index: 4, kind: input, shape index: {}]
  %s5 = inlined_call_operand.vmem [shape: bf16[128,128], index: 5, kind: output, shape index: {}]
  %s6 = sld [smem:[#allocation0]]
  $region30: #{orbit_gnn_forward.2} parent=0
    _
  %s8 = ssub.s32 1, %s6
  %s9 = scalar_select 0, %s8, %s6
  // Predicated region
  $region2: #{orbit_gnn_forward.2} parent=0 // pred_check
    _
  $region3: #{orbit_gnn_forward.2} parent=0 // pred_check_branch
    %11 = sbr.rel (0) target = $region5
  $region4: #{orbit_gnn_forward.2} parent=0 // pred_region
    _
  $region5: #{orbit_gnn_forward.2} parent=0 // pred_fallthru
    _
  // Predicated region
  $region6: #{orbit_gnn_forward.2} parent=0 // pred_check
    _
  $region7: #{orbit_gnn_forward.2} parent=0 // pred_check_branch
    %13 = sbr.rel (0) target = $region9
  $region8: #{orbit_gnn_forward.2} parent=0 // pred_region
    _
  $region9: #{orbit_gnn_forward.2} parent=0 // pred_fallthru
    _
  // Predicated region
  $region10: #{orbit_gnn_forward.2} parent=0 // pred_check
    _
  $region11: #{orbit_gnn_forward.2} parent=0 // pred_check_branch
    %15 = sbr.rel (0) target = $region13
  $region12: #{orbit_gnn_forward.2} parent=0 // pred_region
    _
  $region13: #{orbit_gnn_forward.2} parent=0 // pred_fallthru
    _
  // Predicated region
  $region14: #{orbit_gnn_forward.2} parent=0 // pred_check
    _
  $region15: #{orbit_gnn_forward.2} parent=0 // pred_check_branch
    %17 = sbr.rel (0) target = $region17
  $region16: #{orbit_gnn_forward.2} parent=0 // pred_region
    _
  $region17: #{orbit_gnn_forward.2} parent=0 // pred_fallthru
    _
  // Predicated region
  $region18: #{orbit_gnn_forward.2} parent=0 // pred_check
    _
  $region19: #{orbit_gnn_forward.2} parent=0 // pred_check_branch
    %19 = sbr.rel (0) target = $region21
  $region20: #{orbit_gnn_forward.2} parent=0 // pred_region
    _
  $region21: #{orbit_gnn_forward.2} parent=0 // pred_fallthru
    _
  %v22 = vld [vmem:[%s0] sm:$0x3]
  %v23 = vld [vmem:[%s0 + $0x2] sm:$0x3]
  %v24 = vld [vmem:[%s0 + $0x4] sm:$0x3]
  %v25 = vld [vmem:[%s0 + $0x6] sm:$0x3]
  %v26 = vld [vmem:[%s0 + $0x8] sm:$0x3]
  %v27 = vld [vmem:[%s0 + $0xa] sm:$0x3]
  %v28 = vld [vmem:[%s0 + $0xc] sm:$0x3]
  %v29 = vld [vmem:[%s0 + $0xe] sm:$0x3]
  %v30 = vld [vmem:[%s0 + $0x10] sm:$0x3]
  %v31 = vld [vmem:[%s0 + $0x12] sm:$0x3]
  %v32 = vld [vmem:[%s0 + $0x14] sm:$0x3]
  %v33 = vld [vmem:[%s0 + $0x16] sm:$0x3]
  %v34 = vld [vmem:[%s0 + $0x18] sm:$0x3]
  %v35 = vld [vmem:[%s0 + $0x1a] sm:$0x3]
  %v36 = vld [vmem:[%s0 + $0x1c] sm:$0x3]
  %v37 = vld [vmem:[%s0 + $0x1e] sm:$0x3]
  %vm38 = vnez %v22
  %vm39 = vnez %v23
  %vm40 = vnez %v24
  %vm41 = vnez %v25
  %vm42 = vnez %v26
  %vm43 = vnez %v27
  %vm44 = vnez %v28
  %vm45 = vnez %v29
  %vm46 = vnez %v30
  %vm47 = vnez %v31
  %vm48 = vnez %v32
  %vm49 = vnez %v33
  %vm50 = vnez %v34
  %vm51 = vnez %v35
  %vm52 = vnez %v36
  %vm53 = vnez %v37
  %v54 = vld [vmem:[%s3] sm:$0xff]
  %v55 = vld [vmem:[%s3 + $0x8] sm:$0xff]
  %v56 = vld [vmem:[%s3 + $0x10] sm:$0xff]
  %v57 = vld [vmem:[%s3 + $0x18] sm:$0xff]
  %v58 = vld [vmem:[%s3 + $0x20] sm:$0xff]
  %v59 = vld [vmem:[%s3 + $0x28] sm:$0xff]
  %v60 = vld [vmem:[%s3 + $0x30] sm:$0xff]
  %v61 = vld [vmem:[%s3 + $0x38] sm:$0xff]
  %v62 = vld [vmem:[%s3 + $0x40] sm:$0xff]
  %v63 = vld [vmem:[%s3 + $0x48] sm:$0xff]
  %v64 = vld [vmem:[%s3 + $0x50] sm:$0xff]
  %v65 = vld [vmem:[%s3 + $0x58] sm:$0xff]
  %v66 = vld [vmem:[%s3 + $0x60] sm:$0xff]
  %v67 = vld [vmem:[%s3 + $0x68] sm:$0xff]
  %v68 = vld [vmem:[%s3 + $0x70] sm:$0xff]
  %v69 = vld [vmem:[%s3 + $0x78] sm:$0xff]
  %v70 = vld [vmem:[%s2] sm:$0x1]
  %72 = vset.pattern.permute.xlu0 0
  %73 = vperm.xlu0 %72, %v54
  %v74 = vpop.permute.xlu0 %73
  %77 = vset.pattern.permute.xlu0 0
  %78 = vperm.xlu0 %77, %v55
  %v79 = vpop.permute.xlu0 %78
  %82 = vset.pattern.permute.xlu0 0
  %83 = vperm.xlu0 %82, %v56
  %v84 = vpop.permute.xlu0 %83
  %87 = vset.pattern.permute.xlu0 0
  %88 = vperm.xlu0 %87, %v57
  %v89 = vpop.permute.xlu0 %88
  %92 = vset.pattern.permute.xlu0 0
  %93 = vperm.xlu0 %92, %v58
  %v94 = vpop.permute.xlu0 %93
  %97 = vset.pattern.permute.xlu0 0
  %98 = vperm.xlu0 %97, %v59
  %v99 = vpop.permute.xlu0 %98
  %102 = vset.pattern.permute.xlu0 0
  %103 = vperm.xlu0 %102, %v60
  %v104 = vpop.permute.xlu0 %103
  %107 = vset.pattern.permute.xlu0 0
  %108 = vperm.xlu0 %107, %v61
  %v109 = vpop.permute.xlu0 %108
  %112 = vset.pattern.permute.xlu0 0
  %113 = vperm.xlu0 %112, %v62
  %v114 = vpop.permute.xlu0 %113
  %117 = vset.pattern.permute.xlu0 0
  %118 = vperm.xlu0 %117, %v63
  %v119 = vpop.permute.xlu0 %118
  %122 = vset.pattern.permute.xlu0 0
  %123 = vperm.xlu0 %122, %v64
  %v124 = vpop.permute.xlu0 %123
  %127 = vset.pattern.permute.xlu0 0
  %128 = vperm.xlu0 %127, %v65
  %v129 = vpop.permute.xlu0 %128
  %132 = vset.pattern.permute.xlu0 0
  %133 = vperm.xlu0 %132, %v66
  %v134 = vpop.permute.xlu0 %133
  %137 = vset.pattern.permute.xlu0 0
  %138 = vperm.xlu0 %137, %v67
  %v139 = vpop.permute.xlu0 %138
  %142 = vset.pattern.permute.xlu0 0
  %143 = vperm.xlu0 %142, %v68
  %v144 = vpop.permute.xlu0 %143
  %147 = vset.pattern.permute.xlu0 0
  %148 = vperm.xlu0 %147, %v69
  %v149 = vpop.permute.xlu0 %148
  %v152 = vperm.slane %v70, 0
  %v154 = vadd.f32 %v74, %v152
  %v155 = vadd.f32 %v79, %v152
  %v156 = vadd.f32 %v84, %v152
  %v157 = vadd.f32 %v89, %v152
  %v158 = vadd.f32 %v94, %v152
  %v159 = vadd.f32 %v99, %v152
  %v160 = vadd.f32 %v104, %v152
  %v161 = vadd.f32 %v109, %v152
  %v162 = vadd.f32 %v114, %v152
  %v163 = vadd.f32 %v119, %v152
  %v164 = vadd.f32 %v124, %v152
  %v165 = vadd.f32 %v129, %v152
  %v166 = vadd.f32 %v134, %v152
  %v167 = vadd.f32 %v139, %v152
  %v168 = vadd.f32 %v144, %v152
  %v169 = vadd.f32 %v149, %v152
  %v170 = vmul.f32 %v154, 0.2
  %v171 = vmul.f32 %v155, 0.2
  %v172 = vmul.f32 %v156, 0.2
  %v173 = vmul.f32 %v157, 0.2
  %v174 = vmul.f32 %v158, 0.2
  %v175 = vmul.f32 %v159, 0.2
  %v176 = vmul.f32 %v160, 0.2
  %v177 = vmul.f32 %v161, 0.2
  %v178 = vmul.f32 %v162, 0.2
  %v179 = vmul.f32 %v163, 0.2
  %v180 = vmul.f32 %v164, 0.2
  %v181 = vmul.f32 %v165, 0.2
  %v182 = vmul.f32 %v166, 0.2
  %v183 = vmul.f32 %v167, 0.2
  %v184 = vmul.f32 %v168, 0.2
  %v185 = vmul.f32 %v169, 0.2
  %v186 = vmax.f32 %v154, %v170
  %v187 = vmax.f32 %v155, %v171
  %v188 = vmax.f32 %v156, %v172
  %v189 = vmax.f32 %v157, %v173
  %v190 = vmax.f32 %v158, %v174
  %v191 = vmax.f32 %v159, %v175
  %v192 = vmax.f32 %v160, %v176
  %v193 = vmax.f32 %v161, %v177
  %v194 = vmax.f32 %v162, %v178
  %v195 = vmax.f32 %v163, %v179
  %v196 = vmax.f32 %v164, %v180
  %v197 = vmax.f32 %v165, %v181
  %v198 = vmax.f32 %v166, %v182
  %v199 = vmax.f32 %v167, %v183
  %v200 = vmax.f32 %v168, %v184
  %v201 = vmax.f32 %v169, %v185
  %v202 = vsel %vm38, 16843009, 0
  %v203 = vsel %vm39, 16843009, 0
  %v204 = vsel %vm40, 16843009, 0
  %v205 = vsel %vm41, 16843009, 0
  %v206 = vsel %vm42, 16843009, 0
  %v207 = vsel %vm43, 16843009, 0
  %v208 = vsel %vm44, 16843009, 0
  %v209 = vsel %vm45, 16843009, 0
  %v210 = vsel %vm46, 16843009, 0
  %v211 = vsel %vm47, 16843009, 0
  %v212 = vsel %vm48, 16843009, 0
  %v213 = vsel %vm49, 16843009, 0
  %v214 = vsel %vm50, 16843009, 0
  %v215 = vsel %vm51, 16843009, 0
  %v216 = vsel %vm52, 16843009, 0
  %v217 = vsel %vm53, 16843009, 0
  %v218 = vunpack.c.0.s8 %v202
  %v219 = vunpack.c.0.s8 %v203
  %v220 = vunpack.c.0.s8 %v204
  %v221 = vunpack.c.0.s8 %v205
  %v222 = vunpack.c.0.s8 %v206
  %v223 = vunpack.c.0.s8 %v207
  %v224 = vunpack.c.0.s8 %v208
  %v225 = vunpack.c.0.s8 %v209
  %v226 = vunpack.c.0.s8 %v210
  %v227 = vunpack.c.0.s8 %v211
  %v228 = vunpack.c.0.s8 %v212
  %v229 = vunpack.c.0.s8 %v213
  %v230 = vunpack.c.0.s8 %v214
  %v231 = vunpack.c.0.s8 %v215
  %v232 = vunpack.c.0.s8 %v216
  %v233 = vunpack.c.0.s8 %v217
  %vm234 = vcmp.ne.s32.totalorder %v218, 0
  %vm235 = vcmp.ne.s32.totalorder %v219, 0
  %vm236 = vcmp.ne.s32.totalorder %v220, 0
  %vm237 = vcmp.ne.s32.totalorder %v221, 0
  %vm238 = vcmp.ne.s32.totalorder %v222, 0
  %vm239 = vcmp.ne.s32.totalorder %v223, 0
  %vm240 = vcmp.ne.s32.totalorder %v224, 0
  %vm241 = vcmp.ne.s32.totalorder %v225, 0
  %vm242 = vcmp.ne.s32.totalorder %v226, 0
  %vm243 = vcmp.ne.s32.totalorder %v227, 0
  %vm244 = vcmp.ne.s32.totalorder %v228, 0
  %vm245 = vcmp.ne.s32.totalorder %v229, 0
  %vm246 = vcmp.ne.s32.totalorder %v230, 0
  %vm247 = vcmp.ne.s32.totalorder %v231, 0
  %vm248 = vcmp.ne.s32.totalorder %v232, 0
  %vm249 = vcmp.ne.s32.totalorder %v233, 0
  %v250 = vsel %vm234, %v186, -1e+30
  %v251 = vsel %vm235, %v187, -1e+30
  %v252 = vsel %vm236, %v188, -1e+30
  %v253 = vsel %vm237, %v189, -1e+30
  %v254 = vsel %vm238, %v190, -1e+30
  %v255 = vsel %vm239, %v191, -1e+30
  %v256 = vsel %vm240, %v192, -1e+30
  %v257 = vsel %vm241, %v193, -1e+30
  %v258 = vsel %vm242, %v194, -1e+30
  %v259 = vsel %vm243, %v195, -1e+30
  %v260 = vsel %vm244, %v196, -1e+30
  %v261 = vsel %vm245, %v197, -1e+30
  %v262 = vsel %vm246, %v198, -1e+30
  %v263 = vsel %vm247, %v199, -1e+30
  %v264 = vsel %vm248, %v200, -1e+30
  %v265 = vsel %vm249, %v201, -1e+30
  %266 = vmax.xlane.f32.xlu0 %v250
  %v267 = vpop.xlane.xlu0 %266
  %268 = vmax.xlane.f32.xlu0 %v251
  %v269 = vpop.xlane.xlu0 %268
  %270 = vmax.xlane.f32.xlu0 %v252
  %v271 = vpop.xlane.xlu0 %270
  %272 = vmax.xlane.f32.xlu0 %v253
  %v273 = vpop.xlane.xlu0 %272
  %274 = vmax.xlane.f32.xlu0 %v254
  %v275 = vpop.xlane.xlu0 %274
  %276 = vmax.xlane.f32.xlu0 %v255
  %v277 = vpop.xlane.xlu0 %276
  %278 = vmax.xlane.f32.xlu0 %v256
  %v279 = vpop.xlane.xlu0 %278
  %280 = vmax.xlane.f32.xlu0 %v257
  %v281 = vpop.xlane.xlu0 %280
  %282 = vmax.xlane.f32.xlu0 %v258
  %v283 = vpop.xlane.xlu0 %282
  %284 = vmax.xlane.f32.xlu0 %v259
  %v285 = vpop.xlane.xlu0 %284
  %286 = vmax.xlane.f32.xlu0 %v260
  %v287 = vpop.xlane.xlu0 %286
  %288 = vmax.xlane.f32.xlu0 %v261
  %v289 = vpop.xlane.xlu0 %288
  %290 = vmax.xlane.f32.xlu0 %v262
  %v291 = vpop.xlane.xlu0 %290
  %292 = vmax.xlane.f32.xlu0 %v263
  %v293 = vpop.xlane.xlu0 %292
  %294 = vmax.xlane.f32.xlu0 %v264
  %v295 = vpop.xlane.xlu0 %294
  %296 = vmax.xlane.f32.xlu0 %v265
  %v297 = vpop.xlane.xlu0 %296
  %v298 = vmax.f32 %v267, 0.0
  %v299 = vmax.f32 %v269, 0.0
  %v300 = vmax.f32 %v271, 0.0
  %v301 = vmax.f32 %v273, 0.0
  %v302 = vmax.f32 %v275, 0.0
  %v303 = vmax.f32 %v277, 0.0
  %v304 = vmax.f32 %v279, 0.0
  %v305 = vmax.f32 %v281, 0.0
  %v306 = vmax.f32 %v283, 0.0
  %v307 = vmax.f32 %v285, 0.0
  %v308 = vmax.f32 %v287, 0.0
  %v309 = vmax.f32 %v289, 0.0
  %v310 = vmax.f32 %v291, 0.0
  %v311 = vmax.f32 %v293, 0.0
  %v312 = vmax.f32 %v295, 0.0
  %v313 = vmax.f32 %v297, 0.0
  %v314 = vsub.f32 %v250, %v298
  %v315 = vsub.f32 %v251, %v299
  %v316 = vsub.f32 %v252, %v300
  %v317 = vsub.f32 %v253, %v301
  %v318 = vsub.f32 %v254, %v302
  %v319 = vsub.f32 %v255, %v303
  %v320 = vsub.f32 %v256, %v304
  %v321 = vsub.f32 %v257, %v305
  %v322 = vsub.f32 %v258, %v306
  %v323 = vsub.f32 %v259, %v307
  %v324 = vsub.f32 %v260, %v308
  %v325 = vsub.f32 %v261, %v309
  %v326 = vsub.f32 %v262, %v310
  %v327 = vsub.f32 %v263, %v311
  %v328 = vsub.f32 %v264, %v312
  %v329 = vsub.f32 %v265, %v313
  %v330 = vmul.f32 %v314, 1.442695
  %v331 = vpow.pop %v330
  %v332 = vmul.f32 %v315, 1.442695
  %v333 = vpow.pop %v332
  %v334 = vmul.f32 %v316, 1.442695
  %v335 = vpow.pop %v334
  %v336 = vmul.f32 %v317, 1.442695
  %v337 = vpow.pop %v336
  %v338 = vmul.f32 %v318, 1.442695
  %v339 = vpow.pop %v338
  %v340 = vmul.f32 %v319, 1.442695
  %v341 = vpow.pop %v340
  %v342 = vmul.f32 %v320, 1.442695
  %v343 = vpow.pop %v342
  %v344 = vmul.f32 %v321, 1.442695
  %v345 = vpow.pop %v344
  %v346 = vmul.f32 %v322, 1.442695
  %v347 = vpow.pop %v346
  %v348 = vmul.f32 %v323, 1.442695
  %v349 = vpow.pop %v348
  %v350 = vmul.f32 %v324, 1.442695
  %v351 = vpow.pop %v350
  %v352 = vmul.f32 %v325, 1.442695
  %v353 = vpow.pop %v352
  %v354 = vmul.f32 %v326, 1.442695
  %v355 = vpow.pop %v354
  %v356 = vmul.f32 %v327, 1.442695
  %v357 = vpow.pop %v356
  %v358 = vmul.f32 %v328, 1.442695
  %v359 = vpow.pop %v358
  %v360 = vmul.f32 %v329, 1.442695
  %v361 = vpow.pop %v360
  %v362 = vpack.c.bf16 %v333, %v331
  %v363 = vpack.c.bf16 %v337, %v335
  %v364 = vpack.c.bf16 %v341, %v339
  %v365 = vpack.c.bf16 %v345, %v343
  %v366 = vpack.c.bf16 %v349, %v347
  %v367 = vpack.c.bf16 %v353, %v351
  %v368 = vpack.c.bf16 %v357, %v355
  %v369 = vpack.c.bf16 %v361, %v359
  %v370 = vld [vmem:[%s1] sm:$0xf]
  %v371 = vld [vmem:[%s1 + $0x4] sm:$0xf]
  %v372 = vld [vmem:[%s1 + $0x8] sm:$0xf]
  %v373 = vld [vmem:[%s1 + $0xc] sm:$0xf]
  %v374 = vld [vmem:[%s1 + $0x10] sm:$0xf]
  %v375 = vld [vmem:[%s1 + $0x14] sm:$0xf]
  %v376 = vld [vmem:[%s1 + $0x18] sm:$0xf]
  %v377 = vld [vmem:[%s1 + $0x1c] sm:$0xf]
  %v378 = vld [vmem:[%s1 + $0x20] sm:$0xf]
  %v379 = vld [vmem:[%s1 + $0x24] sm:$0xf]
  %v380 = vld [vmem:[%s1 + $0x28] sm:$0xf]
  %v381 = vld [vmem:[%s1 + $0x2c] sm:$0xf]
  %v382 = vld [vmem:[%s1 + $0x30] sm:$0xf]
  %v383 = vld [vmem:[%s1 + $0x34] sm:$0xf]
  %v384 = vld [vmem:[%s1 + $0x38] sm:$0xf]
  %v385 = vld [vmem:[%s1 + $0x3c] sm:$0xf]
  %v402 = vunpack.c.l.b16 %v370
  %v403 = vunpack.c.l.b16 %v371
  %v404 = vunpack.c.l.b16 %v372
  %v405 = vunpack.c.l.b16 %v373
  %v406 = vunpack.c.l.b16 %v374
  %v407 = vunpack.c.l.b16 %v375
  %v408 = vunpack.c.l.b16 %v376
  %v409 = vunpack.c.l.b16 %v377
  %v410 = vunpack.c.l.b16 %v378
  %v411 = vunpack.c.l.b16 %v379
  %v412 = vunpack.c.l.b16 %v380
  %v413 = vunpack.c.l.b16 %v381
  %v414 = vunpack.c.l.b16 %v382
  %v415 = vunpack.c.l.b16 %v383
  %v416 = vunpack.c.l.b16 %v384
  %v417 = vunpack.c.l.b16 %v385
  %v418 = vpack.c.b16 %v403, %v402
  %v419 = vpack.c.b16 %v405, %v404
  %v420 = vpack.c.b16 %v407, %v406
  %v421 = vpack.c.b16 %v409, %v408
  %v422 = vpack.c.b16 %v411, %v410
  %v423 = vpack.c.b16 %v413, %v412
  %v424 = vpack.c.b16 %v415, %v414
  %v425 = vpack.c.b16 %v417, %v416
  %434 = vmatpush.bf16.msra.mxu0 %v425
  %435 = vmatpush.bf16.msra.mxu0 %v424
  %436 = vmatpush.bf16.msra.mxu0 %v423
  %437 = vmatpush.bf16.msra.mxu0 %v422
  %438 = vmatpush.bf16.msra.mxu0 %v421
  %439 = vmatpush.bf16.msra.mxu0 %v420
  %440 = vmatpush.bf16.msra.mxu0 %v419
  %441 = vmatpush.bf16.msra.mxu0 %v418
  %442 = vmatmul.bf16.gmra.mxu0 %v362
  %v443 = vpop.f32.mrf.mxu0
  %v444 = vadd.f32 0.0, %v443
  %v445 = vpop.f32.mrf.mxu0
  %v446 = vadd.f32 0.0, %v445
  %447 = vmatmul.bf16.gmra.mxu0 %v363
  %v448 = vpop.f32.mrf.mxu0
  %v449 = vadd.f32 0.0, %v448
  %v450 = vpop.f32.mrf.mxu0
  %v451 = vadd.f32 0.0, %v450
  %452 = vmatmul.bf16.gmra.mxu0 %v364
  %v453 = vpop.f32.mrf.mxu0
  %v454 = vadd.f32 0.0, %v453
  %v455 = vpop.f32.mrf.mxu0
  %v456 = vadd.f32 0.0, %v455
  %457 = vmatmul.bf16.gmra.mxu0 %v365
  %v458 = vpop.f32.mrf.mxu0
  %v459 = vadd.f32 0.0, %v458
  %v460 = vpop.f32.mrf.mxu0
  %v461 = vadd.f32 0.0, %v460
  %462 = vmatmul.bf16.gmra.mxu0 %v366
  %v463 = vpop.f32.mrf.mxu0
  %v464 = vadd.f32 0.0, %v463
  %v465 = vpop.f32.mrf.mxu0
  %v466 = vadd.f32 0.0, %v465
  %467 = vmatmul.bf16.gmra.mxu0 %v367
  %v468 = vpop.f32.mrf.mxu0
  %v469 = vadd.f32 0.0, %v468
  %v470 = vpop.f32.mrf.mxu0
  %v471 = vadd.f32 0.0, %v470
  %472 = vmatmul.bf16.gmra.mxu0 %v368
  %v473 = vpop.f32.mrf.mxu0
  %v474 = vadd.f32 0.0, %v473
  %v475 = vpop.f32.mrf.mxu0
  %v476 = vadd.f32 0.0, %v475
  %477 = vmatmul.bf16.gmra.mxu0 %v369
  %v478 = vpop.f32.mrf.mxu0
  %v479 = vadd.f32 0.0, %v478
  %v480 = vpop.f32.mrf.mxu0
  %v481 = vadd.f32 0.0, %v480
  %482 = vdwg.mxu0
  %vm483 = vcmp.gt.f32.partialorder %v444, 0.0
  %vm484 = vcmp.gt.f32.partialorder %v446, 0.0
  %vm485 = vcmp.gt.f32.partialorder %v449, 0.0
  %vm486 = vcmp.gt.f32.partialorder %v451, 0.0
  %vm487 = vcmp.gt.f32.partialorder %v454, 0.0
  %vm488 = vcmp.gt.f32.partialorder %v456, 0.0
  %vm489 = vcmp.gt.f32.partialorder %v459, 0.0
  %vm490 = vcmp.gt.f32.partialorder %v461, 0.0
  %vm491 = vcmp.gt.f32.partialorder %v464, 0.0
  %vm492 = vcmp.gt.f32.partialorder %v466, 0.0
  %vm493 = vcmp.gt.f32.partialorder %v469, 0.0
  %vm494 = vcmp.gt.f32.partialorder %v471, 0.0
  %vm495 = vcmp.gt.f32.partialorder %v474, 0.0
  %vm496 = vcmp.gt.f32.partialorder %v476, 0.0
  %vm497 = vcmp.gt.f32.partialorder %v479, 0.0
  %vm498 = vcmp.gt.f32.partialorder %v481, 0.0
  %v499 = vsel %vm483, %v444, 1.0
  %v500 = vsel %vm484, %v446, 1.0
  %v501 = vsel %vm485, %v449, 1.0
  %v502 = vsel %vm486, %v451, 1.0
  %v503 = vsel %vm487, %v454, 1.0
  %v504 = vsel %vm488, %v456, 1.0
  %v505 = vsel %vm489, %v459, 1.0
  %v506 = vsel %vm490, %v461, 1.0
  %v507 = vsel %vm491, %v464, 1.0
  %v508 = vsel %vm492, %v466, 1.0
  %v509 = vsel %vm493, %v469, 1.0
  %v510 = vsel %vm494, %v471, 1.0
  %v511 = vsel %vm495, %v474, 1.0
  %v512 = vsel %vm496, %v476, 1.0
  %v513 = vsel %vm497, %v479, 1.0
  %v514 = vsel %vm498, %v481, 1.0
  %v515 = vrcp.pop %v499
  %v516 = vrcp.pop %v500
  %v517 = vrcp.pop %v501
  %v518 = vrcp.pop %v502
  %v519 = vrcp.pop %v503
  %v520 = vrcp.pop %v504
  %v521 = vrcp.pop %v505
  %v522 = vrcp.pop %v506
  %v523 = vrcp.pop %v507
  %v524 = vrcp.pop %v508
  %v525 = vrcp.pop %v509
  %v526 = vrcp.pop %v510
  %v527 = vrcp.pop %v511
  %v528 = vrcp.pop %v512
  %v529 = vrcp.pop %v513
  %v530 = vrcp.pop %v514
  %532 = vset.pattern.permute.xlu0 64
  %533 = vperm.xlu0 %532, %v515
  %v534 = vpop.permute.xlu0 %533
  %537 = vset.pattern.permute.xlu0 64
  %538 = vperm.xlu0 %537, %v516
  %v539 = vpop.permute.xlu0 %538
  %542 = vset.pattern.permute.xlu0 64
  %543 = vperm.xlu0 %542, %v517
  %v544 = vpop.permute.xlu0 %543
  %547 = vset.pattern.permute.xlu0 64
  %548 = vperm.xlu0 %547, %v518
  %v549 = vpop.permute.xlu0 %548
  %552 = vset.pattern.permute.xlu0 64
  %553 = vperm.xlu0 %552, %v519
  %v554 = vpop.permute.xlu0 %553
  %557 = vset.pattern.permute.xlu0 64
  %558 = vperm.xlu0 %557, %v520
  %v559 = vpop.permute.xlu0 %558
  %562 = vset.pattern.permute.xlu0 64
  %563 = vperm.xlu0 %562, %v521
  %v564 = vpop.permute.xlu0 %563
  %567 = vset.pattern.permute.xlu0 64
  %568 = vperm.xlu0 %567, %v522
  %v569 = vpop.permute.xlu0 %568
  %572 = vset.pattern.permute.xlu0 64
  %573 = vperm.xlu0 %572, %v523
  %v574 = vpop.permute.xlu0 %573
  %577 = vset.pattern.permute.xlu0 64
  %578 = vperm.xlu0 %577, %v524
  %v579 = vpop.permute.xlu0 %578
  %582 = vset.pattern.permute.xlu0 64
  %583 = vperm.xlu0 %582, %v525
  %v584 = vpop.permute.xlu0 %583
  %587 = vset.pattern.permute.xlu0 64
  %588 = vperm.xlu0 %587, %v526
  %v589 = vpop.permute.xlu0 %588
  %592 = vset.pattern.permute.xlu0 64
  %593 = vperm.xlu0 %592, %v527
  %v594 = vpop.permute.xlu0 %593
  %597 = vset.pattern.permute.xlu0 64
  %598 = vperm.xlu0 %597, %v528
  %v599 = vpop.permute.xlu0 %598
  %602 = vset.pattern.permute.xlu0 64
  %603 = vperm.xlu0 %602, %v529
  %v604 = vpop.permute.xlu0 %603
  %607 = vset.pattern.permute.xlu0 64
  %608 = vperm.xlu0 %607, %v530
  %v609 = vpop.permute.xlu0 %608
  %v611 = vmul.f32 %v444, %v534
  %v612 = vmul.f32 %v446, %v539
  %v613 = vmul.f32 %v449, %v544
  %v614 = vmul.f32 %v451, %v549
  %v615 = vmul.f32 %v454, %v554
  %v616 = vmul.f32 %v456, %v559
  %v617 = vmul.f32 %v459, %v564
  %v618 = vmul.f32 %v461, %v569
  %v619 = vmul.f32 %v464, %v574
  %v620 = vmul.f32 %v466, %v579
  %v621 = vmul.f32 %v469, %v584
  %v622 = vmul.f32 %v471, %v589
  %v623 = vmul.f32 %v474, %v594
  %v624 = vmul.f32 %v476, %v599
  %v625 = vmul.f32 %v479, %v604
  %v626 = vmul.f32 %v481, %v609
  %s627 = scalar_lea.vmem %s2, 1
  %v628 = vld [vmem:[%s627] sm:$0x1]
  %629 = vset.pattern.permute.xlu0 1
  %630 = vperm.xlu0 %629, %v54
  %v631 = vpop.permute.xlu0 %630
  %633 = vset.pattern.permute.xlu0 1
  %634 = vperm.xlu0 %633, %v55
  %v635 = vpop.permute.xlu0 %634
  %637 = vset.pattern.permute.xlu0 1
  %638 = vperm.xlu0 %637, %v56
  %v639 = vpop.permute.xlu0 %638
  %641 = vset.pattern.permute.xlu0 1
  %642 = vperm.xlu0 %641, %v57
  %v643 = vpop.permute.xlu0 %642
  %645 = vset.pattern.permute.xlu0 1
  %646 = vperm.xlu0 %645, %v58
  %v647 = vpop.permute.xlu0 %646
  %649 = vset.pattern.permute.xlu0 1
  %650 = vperm.xlu0 %649, %v59
  %v651 = vpop.permute.xlu0 %650
  %653 = vset.pattern.permute.xlu0 1
  %654 = vperm.xlu0 %653, %v60
  %v655 = vpop.permute.xlu0 %654
  %657 = vset.pattern.permute.xlu0 1
  %658 = vperm.xlu0 %657, %v61
  %v659 = vpop.permute.xlu0 %658
  %661 = vset.pattern.permute.xlu0 1
  %662 = vperm.xlu0 %661, %v62
  %v663 = vpop.permute.xlu0 %662
  %665 = vset.pattern.permute.xlu0 1
  %666 = vperm.xlu0 %665, %v63
  %v667 = vpop.permute.xlu0 %666
  %669 = vset.pattern.permute.xlu0 1
  %670 = vperm.xlu0 %669, %v64
  %v671 = vpop.permute.xlu0 %670
  %673 = vset.pattern.permute.xlu0 1
  %674 = vperm.xlu0 %673, %v65
  %v675 = vpop.permute.xlu0 %674
  %677 = vset.pattern.permute.xlu0 1
  %678 = vperm.xlu0 %677, %v66
  %v679 = vpop.permute.xlu0 %678
  %681 = vset.pattern.permute.xlu0 1
  %682 = vperm.xlu0 %681, %v67
  %v683 = vpop.permute.xlu0 %682
  %685 = vset.pattern.permute.xlu0 1
  %686 = vperm.xlu0 %685, %v68
  %v687 = vpop.permute.xlu0 %686
  %689 = vset.pattern.permute.xlu0 1
  %690 = vperm.xlu0 %689, %v69
  %v691 = vpop.permute.xlu0 %690
  %v694 = vperm.slane %v628, 0
  %v696 = vadd.f32 %v631, %v694
  %v697 = vadd.f32 %v635, %v694
  %v698 = vadd.f32 %v639, %v694
  %v699 = vadd.f32 %v643, %v694
  %v700 = vadd.f32 %v647, %v694
  %v701 = vadd.f32 %v651, %v694
  %v702 = vadd.f32 %v655, %v694
  %v703 = vadd.f32 %v659, %v694
  %v704 = vadd.f32 %v663, %v694
  %v705 = vadd.f32 %v667, %v694
  %v706 = vadd.f32 %v671, %v694
  %v707 = vadd.f32 %v675, %v694
  %v708 = vadd.f32 %v679, %v694
  %v709 = vadd.f32 %v683, %v694
  %v710 = vadd.f32 %v687, %v694
  %v711 = vadd.f32 %v691, %v694
  %v712 = vmul.f32 %v696, 0.2
  %v713 = vmul.f32 %v697, 0.2
  %v714 = vmul.f32 %v698, 0.2
  %v715 = vmul.f32 %v699, 0.2
  %v716 = vmul.f32 %v700, 0.2
  %v717 = vmul.f32 %v701, 0.2
  %v718 = vmul.f32 %v702, 0.2
  %v719 = vmul.f32 %v703, 0.2
  %v720 = vmul.f32 %v704, 0.2
  %v721 = vmul.f32 %v705, 0.2
  %v722 = vmul.f32 %v706, 0.2
  %v723 = vmul.f32 %v707, 0.2
  %v724 = vmul.f32 %v708, 0.2
  %v725 = vmul.f32 %v709, 0.2
  %v726 = vmul.f32 %v710, 0.2
  %v727 = vmul.f32 %v711, 0.2
  %v728 = vmax.f32 %v696, %v712
  %v729 = vmax.f32 %v697, %v713
  %v730 = vmax.f32 %v698, %v714
  %v731 = vmax.f32 %v699, %v715
  %v732 = vmax.f32 %v700, %v716
  %v733 = vmax.f32 %v701, %v717
  %v734 = vmax.f32 %v702, %v718
  %v735 = vmax.f32 %v703, %v719
  %v736 = vmax.f32 %v704, %v720
  %v737 = vmax.f32 %v705, %v721
  %v738 = vmax.f32 %v706, %v722
  %v739 = vmax.f32 %v707, %v723
  %v740 = vmax.f32 %v708, %v724
  %v741 = vmax.f32 %v709, %v725
  %v742 = vmax.f32 %v710, %v726
  %v743 = vmax.f32 %v711, %v727
  %v744 = vsel %vm234, %v728, -1e+30
  %v745 = vsel %vm235, %v729, -1e+30
  %v746 = vsel %vm236, %v730, -1e+30
  %v747 = vsel %vm237, %v731, -1e+30
  %v748 = vsel %vm238, %v732, -1e+30
  %v749 = vsel %vm239, %v733, -1e+30
  %v750 = vsel %vm240, %v734, -1e+30
  %v751 = vsel %vm241, %v735, -1e+30
  %v752 = vsel %vm242, %v736, -1e+30
  %v753 = vsel %vm243, %v737, -1e+30
  %v754 = vsel %vm244, %v738, -1e+30
  %v755 = vsel %vm245, %v739, -1e+30
  %v756 = vsel %vm246, %v740, -1e+30
  %v757 = vsel %vm247, %v741, -1e+30
  %v758 = vsel %vm248, %v742, -1e+30
  %v759 = vsel %vm249, %v743, -1e+30
  %760 = vmax.xlane.f32.xlu0 %v744
  %v761 = vpop.xlane.xlu0 %760
  %762 = vmax.xlane.f32.xlu0 %v745
  %v763 = vpop.xlane.xlu0 %762
  %764 = vmax.xlane.f32.xlu0 %v746
  %v765 = vpop.xlane.xlu0 %764
  %766 = vmax.xlane.f32.xlu0 %v747
  %v767 = vpop.xlane.xlu0 %766
  %768 = vmax.xlane.f32.xlu0 %v748
  %v769 = vpop.xlane.xlu0 %768
  %770 = vmax.xlane.f32.xlu0 %v749
  %v771 = vpop.xlane.xlu0 %770
  %772 = vmax.xlane.f32.xlu0 %v750
  %v773 = vpop.xlane.xlu0 %772
  %774 = vmax.xlane.f32.xlu0 %v751
  %v775 = vpop.xlane.xlu0 %774
  %776 = vmax.xlane.f32.xlu0 %v752
  %v777 = vpop.xlane.xlu0 %776
  %778 = vmax.xlane.f32.xlu0 %v753
  %v779 = vpop.xlane.xlu0 %778
  %780 = vmax.xlane.f32.xlu0 %v754
  %v781 = vpop.xlane.xlu0 %780
  %782 = vmax.xlane.f32.xlu0 %v755
  %v783 = vpop.xlane.xlu0 %782
  %784 = vmax.xlane.f32.xlu0 %v756
  %v785 = vpop.xlane.xlu0 %784
  %786 = vmax.xlane.f32.xlu0 %v757
  %v787 = vpop.xlane.xlu0 %786
  %788 = vmax.xlane.f32.xlu0 %v758
  %v789 = vpop.xlane.xlu0 %788
  %790 = vmax.xlane.f32.xlu0 %v759
  %v791 = vpop.xlane.xlu0 %790
  %v792 = vmax.f32 %v761, 0.0
  %v793 = vmax.f32 %v763, 0.0
  %v794 = vmax.f32 %v765, 0.0
  %v795 = vmax.f32 %v767, 0.0
  %v796 = vmax.f32 %v769, 0.0
  %v797 = vmax.f32 %v771, 0.0
  %v798 = vmax.f32 %v773, 0.0
  %v799 = vmax.f32 %v775, 0.0
  %v800 = vmax.f32 %v777, 0.0
  %v801 = vmax.f32 %v779, 0.0
  %v802 = vmax.f32 %v781, 0.0
  %v803 = vmax.f32 %v783, 0.0
  %v804 = vmax.f32 %v785, 0.0
  %v805 = vmax.f32 %v787, 0.0
  %v806 = vmax.f32 %v789, 0.0
  %v807 = vmax.f32 %v791, 0.0
  %v808 = vsub.f32 %v744, %v792
  %v809 = vsub.f32 %v745, %v793
  %v810 = vsub.f32 %v746, %v794
  %v811 = vsub.f32 %v747, %v795
  %v812 = vsub.f32 %v748, %v796
  %v813 = vsub.f32 %v749, %v797
  %v814 = vsub.f32 %v750, %v798
  %v815 = vsub.f32 %v751, %v799
  %v816 = vsub.f32 %v752, %v800
  %v817 = vsub.f32 %v753, %v801
  %v818 = vsub.f32 %v754, %v802
  %v819 = vsub.f32 %v755, %v803
  %v820 = vsub.f32 %v756, %v804
  %v821 = vsub.f32 %v757, %v805
  %v822 = vsub.f32 %v758, %v806
  %v823 = vsub.f32 %v759, %v807
  %v824 = vmul.f32 %v808, 1.442695
  %v825 = vpow.pop %v824
  %v826 = vmul.f32 %v809, 1.442695
  %v827 = vpow.pop %v826
  %v828 = vmul.f32 %v810, 1.442695
  %v829 = vpow.pop %v828
  %v830 = vmul.f32 %v811, 1.442695
  %v831 = vpow.pop %v830
  %v832 = vmul.f32 %v812, 1.442695
  %v833 = vpow.pop %v832
  %v834 = vmul.f32 %v813, 1.442695
  %v835 = vpow.pop %v834
  %v836 = vmul.f32 %v814, 1.442695
  %v837 = vpow.pop %v836
  %v838 = vmul.f32 %v815, 1.442695
  %v839 = vpow.pop %v838
  %v840 = vmul.f32 %v816, 1.442695
  %v841 = vpow.pop %v840
  %v842 = vmul.f32 %v817, 1.442695
  %v843 = vpow.pop %v842
  %v844 = vmul.f32 %v818, 1.442695
  %v845 = vpow.pop %v844
  %v846 = vmul.f32 %v819, 1.442695
  %v847 = vpow.pop %v846
  %v848 = vmul.f32 %v820, 1.442695
  %v849 = vpow.pop %v848
  %v850 = vmul.f32 %v821, 1.442695
  %v851 = vpow.pop %v850
  %v852 = vmul.f32 %v822, 1.442695
  %v853 = vpow.pop %v852
  %v854 = vmul.f32 %v823, 1.442695
  %v855 = vpow.pop %v854
  %v856 = vpack.c.bf16 %v827, %v825
  %v857 = vpack.c.bf16 %v831, %v829
  %v858 = vpack.c.bf16 %v835, %v833
  %v859 = vpack.c.bf16 %v839, %v837
  %v860 = vpack.c.bf16 %v843, %v841
  %v861 = vpack.c.bf16 %v847, %v845
  %v862 = vpack.c.bf16 %v851, %v849
  %v863 = vpack.c.bf16 %v855, %v853
  %s864 = scalar_lea.vmem %s1, 64
  %v865 = vld [vmem:[%s864] sm:$0xf]
  %v866 = vld [vmem:[%s864 + $0x4] sm:$0xf]
  %v867 = vld [vmem:[%s864 + $0x8] sm:$0xf]
  %v868 = vld [vmem:[%s864 + $0xc] sm:$0xf]
  %v869 = vld [vmem:[%s864 + $0x10] sm:$0xf]
  %v870 = vld [vmem:[%s864 + $0x14] sm:$0xf]
  %v871 = vld [vmem:[%s864 + $0x18] sm:$0xf]
  %v872 = vld [vmem:[%s864 + $0x1c] sm:$0xf]
  %v873 = vld [vmem:[%s864 + $0x20] sm:$0xf]
  %v874 = vld [vmem:[%s864 + $0x24] sm:$0xf]
  %v875 = vld [vmem:[%s864 + $0x28] sm:$0xf]
  %v876 = vld [vmem:[%s864 + $0x2c] sm:$0xf]
  %v877 = vld [vmem:[%s864 + $0x30] sm:$0xf]
  %v878 = vld [vmem:[%s864 + $0x34] sm:$0xf]
  %v879 = vld [vmem:[%s864 + $0x38] sm:$0xf]
  %v880 = vld [vmem:[%s864 + $0x3c] sm:$0xf]
  %v897 = vunpack.c.l.b16 %v865
  %v898 = vunpack.c.l.b16 %v866
  %v899 = vunpack.c.l.b16 %v867
  %v900 = vunpack.c.l.b16 %v868
  %v901 = vunpack.c.l.b16 %v869
  %v902 = vunpack.c.l.b16 %v870
  %v903 = vunpack.c.l.b16 %v871
  %v904 = vunpack.c.l.b16 %v872
  %v905 = vunpack.c.l.b16 %v873
  %v906 = vunpack.c.l.b16 %v874
  %v907 = vunpack.c.l.b16 %v875
  %v908 = vunpack.c.l.b16 %v876
  %v909 = vunpack.c.l.b16 %v877
  %v910 = vunpack.c.l.b16 %v878
  %v911 = vunpack.c.l.b16 %v879
  %v912 = vunpack.c.l.b16 %v880
  %v913 = vpack.c.b16 %v898, %v897
  %v914 = vpack.c.b16 %v900, %v899
  %v915 = vpack.c.b16 %v902, %v901
  %v916 = vpack.c.b16 %v904, %v903
  %v917 = vpack.c.b16 %v906, %v905
  %v918 = vpack.c.b16 %v908, %v907
  %v919 = vpack.c.b16 %v910, %v909
  %v920 = vpack.c.b16 %v912, %v911
  %929 = vmatpush.bf16.msra.mxu0 %v920
  %930 = vmatpush.bf16.msra.mxu0 %v919
  %931 = vmatpush.bf16.msra.mxu0 %v918
  %932 = vmatpush.bf16.msra.mxu0 %v917
  %933 = vmatpush.bf16.msra.mxu0 %v916
  %934 = vmatpush.bf16.msra.mxu0 %v915
  %935 = vmatpush.bf16.msra.mxu0 %v914
  %936 = vmatpush.bf16.msra.mxu0 %v913
  %937 = vmatmul.bf16.gmra.mxu0 %v856
  %v938 = vpop.f32.mrf.mxu0
  %v939 = vadd.f32 0.0, %v938
  %v940 = vpop.f32.mrf.mxu0
  %v941 = vadd.f32 0.0, %v940
  %942 = vmatmul.bf16.gmra.mxu0 %v857
  %v943 = vpop.f32.mrf.mxu0
  %v944 = vadd.f32 0.0, %v943
  %v945 = vpop.f32.mrf.mxu0
  %v946 = vadd.f32 0.0, %v945
  %947 = vmatmul.bf16.gmra.mxu0 %v858
  %v948 = vpop.f32.mrf.mxu0
  %v949 = vadd.f32 0.0, %v948
  %v950 = vpop.f32.mrf.mxu0
  %v951 = vadd.f32 0.0, %v950
  %952 = vmatmul.bf16.gmra.mxu0 %v859
  %v953 = vpop.f32.mrf.mxu0
  %v954 = vadd.f32 0.0, %v953
  %v955 = vpop.f32.mrf.mxu0
  %v956 = vadd.f32 0.0, %v955
  %957 = vmatmul.bf16.gmra.mxu0 %v860
  %v958 = vpop.f32.mrf.mxu0
  %v959 = vadd.f32 0.0, %v958
  %v960 = vpop.f32.mrf.mxu0
  %v961 = vadd.f32 0.0, %v960
  %962 = vmatmul.bf16.gmra.mxu0 %v861
  %v963 = vpop.f32.mrf.mxu0
  %v964 = vadd.f32 0.0, %v963
  %v965 = vpop.f32.mrf.mxu0
  %v966 = vadd.f32 0.0, %v965
  %967 = vmatmul.bf16.gmra.mxu0 %v862
  %v968 = vpop.f32.mrf.mxu0
  %v969 = vadd.f32 0.0, %v968
  %v970 = vpop.f32.mrf.mxu0
  %v971 = vadd.f32 0.0, %v970
  %972 = vmatmul.bf16.gmra.mxu0 %v863
  %v973 = vpop.f32.mrf.mxu0
  %v974 = vadd.f32 0.0, %v973
  %v975 = vpop.f32.mrf.mxu0
  %v976 = vadd.f32 0.0, %v975
  %977 = vdwg.mxu0
  %vm978 = vcmp.gt.f32.partialorder %v939, 0.0
  %vm979 = vcmp.gt.f32.partialorder %v941, 0.0
  %vm980 = vcmp.gt.f32.partialorder %v944, 0.0
  %vm981 = vcmp.gt.f32.partialorder %v946, 0.0
  %vm982 = vcmp.gt.f32.partialorder %v949, 0.0
  %vm983 = vcmp.gt.f32.partialorder %v951, 0.0
  %vm984 = vcmp.gt.f32.partialorder %v954, 0.0
  %vm985 = vcmp.gt.f32.partialorder %v956, 0.0
  %vm986 = vcmp.gt.f32.partialorder %v959, 0.0
  %vm987 = vcmp.gt.f32.partialorder %v961, 0.0
  %vm988 = vcmp.gt.f32.partialorder %v964, 0.0
  %vm989 = vcmp.gt.f32.partialorder %v966, 0.0
  %vm990 = vcmp.gt.f32.partialorder %v969, 0.0
  %vm991 = vcmp.gt.f32.partialorder %v971, 0.0
  %vm992 = vcmp.gt.f32.partialorder %v974, 0.0
  %vm993 = vcmp.gt.f32.partialorder %v976, 0.0
  %v994 = vsel %vm978, %v939, 1.0
  %v995 = vsel %vm979, %v941, 1.0
  %v996 = vsel %vm980, %v944, 1.0
  %v997 = vsel %vm981, %v946, 1.0
  %v998 = vsel %vm982, %v949, 1.0
  %v999 = vsel %vm983, %v951, 1.0
  %v1000 = vsel %vm984, %v954, 1.0
  %v1001 = vsel %vm985, %v956, 1.0
  %v1002 = vsel %vm986, %v959, 1.0
  %v1003 = vsel %vm987, %v961, 1.0
  %v1004 = vsel %vm988, %v964, 1.0
  %v1005 = vsel %vm989, %v966, 1.0
  %v1006 = vsel %vm990, %v969, 1.0
  %v1007 = vsel %vm991, %v971, 1.0
  %v1008 = vsel %vm992, %v974, 1.0
  %v1009 = vsel %vm993, %v976, 1.0
  %v1010 = vrcp.pop %v994
  %v1011 = vrcp.pop %v995
  %v1012 = vrcp.pop %v996
  %v1013 = vrcp.pop %v997
  %v1014 = vrcp.pop %v998
  %v1015 = vrcp.pop %v999
  %v1016 = vrcp.pop %v1000
  %v1017 = vrcp.pop %v1001
  %v1018 = vrcp.pop %v1002
  %v1019 = vrcp.pop %v1003
  %v1020 = vrcp.pop %v1004
  %v1021 = vrcp.pop %v1005
  %v1022 = vrcp.pop %v1006
  %v1023 = vrcp.pop %v1007
  %v1024 = vrcp.pop %v1008
  %v1025 = vrcp.pop %v1009
  %1027 = vset.pattern.permute.xlu0 64
  %1028 = vperm.xlu0 %1027, %v1010
  %v1029 = vpop.permute.xlu0 %1028
  %1032 = vset.pattern.permute.xlu0 64
  %1033 = vperm.xlu0 %1032, %v1011
  %v1034 = vpop.permute.xlu0 %1033
  %1037 = vset.pattern.permute.xlu0 64
  %1038 = vperm.xlu0 %1037, %v1012
  %v1039 = vpop.permute.xlu0 %1038
  %1042 = vset.pattern.permute.xlu0 64
  %1043 = vperm.xlu0 %1042, %v1013
  %v1044 = vpop.permute.xlu0 %1043
  %1047 = vset.pattern.permute.xlu0 64
  %1048 = vperm.xlu0 %1047, %v1014
  %v1049 = vpop.permute.xlu0 %1048
  %1052 = vset.pattern.permute.xlu0 64
  %1053 = vperm.xlu0 %1052, %v1015
  %v1054 = vpop.permute.xlu0 %1053
  %1057 = vset.pattern.permute.xlu0 64
  %1058 = vperm.xlu0 %1057, %v1016
  %v1059 = vpop.permute.xlu0 %1058
  %1062 = vset.pattern.permute.xlu0 64
  %1063 = vperm.xlu0 %1062, %v1017
  %v1064 = vpop.permute.xlu0 %1063
  %1067 = vset.pattern.permute.xlu0 64
  %1068 = vperm.xlu0 %1067, %v1018
  %v1069 = vpop.permute.xlu0 %1068
  %1072 = vset.pattern.permute.xlu0 64
  %1073 = vperm.xlu0 %1072, %v1019
  %v1074 = vpop.permute.xlu0 %1073
  %1077 = vset.pattern.permute.xlu0 64
  %1078 = vperm.xlu0 %1077, %v1020
  %v1079 = vpop.permute.xlu0 %1078
  %1082 = vset.pattern.permute.xlu0 64
  %1083 = vperm.xlu0 %1082, %v1021
  %v1084 = vpop.permute.xlu0 %1083
  %1087 = vset.pattern.permute.xlu0 64
  %1088 = vperm.xlu0 %1087, %v1022
  %v1089 = vpop.permute.xlu0 %1088
  %1092 = vset.pattern.permute.xlu0 64
  %1093 = vperm.xlu0 %1092, %v1023
  %v1094 = vpop.permute.xlu0 %1093
  %1097 = vset.pattern.permute.xlu0 64
  %1098 = vperm.xlu0 %1097, %v1024
  %v1099 = vpop.permute.xlu0 %1098
  %1102 = vset.pattern.permute.xlu0 64
  %1103 = vperm.xlu0 %1102, %v1025
  %v1104 = vpop.permute.xlu0 %1103
  %v1106 = vmul.f32 %v939, %v1029
  %v1107 = vmul.f32 %v941, %v1034
  %v1108 = vmul.f32 %v944, %v1039
  %v1109 = vmul.f32 %v946, %v1044
  %v1110 = vmul.f32 %v949, %v1049
  %v1111 = vmul.f32 %v951, %v1054
  %v1112 = vmul.f32 %v954, %v1059
  %v1113 = vmul.f32 %v956, %v1064
  %v1114 = vmul.f32 %v959, %v1069
  %v1115 = vmul.f32 %v961, %v1074
  %v1116 = vmul.f32 %v964, %v1079
  %v1117 = vmul.f32 %v966, %v1084
  %v1118 = vmul.f32 %v969, %v1089
  %v1119 = vmul.f32 %v971, %v1094
  %v1120 = vmul.f32 %v974, %v1099
  %v1121 = vmul.f32 %v976, %v1104
  %v1122 = vld [vmem:[%s4] sm:$0x1]
  %v1124 = vperm.slane %v1122, 0
  %v1126 = vadd.f32 %v611, %v1124
  %v1127 = vadd.f32 %v612, %v1124
  %v1128 = vadd.f32 %v613, %v1124
  %v1129 = vadd.f32 %v614, %v1124
  %v1130 = vadd.f32 %v615, %v1124
  %v1131 = vadd.f32 %v616, %v1124
  %v1132 = vadd.f32 %v617, %v1124
  %v1133 = vadd.f32 %v618, %v1124
  %v1134 = vadd.f32 %v619, %v1124
  %v1135 = vadd.f32 %v620, %v1124
  %v1136 = vadd.f32 %v621, %v1124
  %v1137 = vadd.f32 %v622, %v1124
  %v1138 = vadd.f32 %v623, %v1124
  %v1139 = vadd.f32 %v624, %v1124
  %v1140 = vadd.f32 %v625, %v1124
  %v1141 = vadd.f32 %v626, %v1124
  %v1142 = vmax.f32 %v1126, 0.0
  %v1143 = vmax.f32 %v1127, 0.0
  %v1144 = vmax.f32 %v1128, 0.0
  %v1145 = vmax.f32 %v1129, 0.0
  %v1146 = vmax.f32 %v1130, 0.0
  %v1147 = vmax.f32 %v1131, 0.0
  %v1148 = vmax.f32 %v1132, 0.0
  %v1149 = vmax.f32 %v1133, 0.0
  %v1150 = vmax.f32 %v1134, 0.0
  %v1151 = vmax.f32 %v1135, 0.0
  %v1152 = vmax.f32 %v1136, 0.0
  %v1153 = vmax.f32 %v1137, 0.0
  %v1154 = vmax.f32 %v1138, 0.0
  %v1155 = vmax.f32 %v1139, 0.0
  %v1156 = vmax.f32 %v1140, 0.0
  %v1157 = vmax.f32 %v1141, 0.0
  %v1158 = vpack.c.bf16 %v1142, %v1142
  %v1159 = vpack.c.bf16 %v1143, %v1143
  %v1160 = vpack.c.bf16 %v1144, %v1144
  %v1161 = vpack.c.bf16 %v1145, %v1145
  %v1162 = vpack.c.bf16 %v1146, %v1146
  %v1163 = vpack.c.bf16 %v1147, %v1147
  %v1164 = vpack.c.bf16 %v1148, %v1148
  %v1165 = vpack.c.bf16 %v1149, %v1149
  %v1166 = vpack.c.bf16 %v1150, %v1150
  %v1167 = vpack.c.bf16 %v1151, %v1151
  %v1168 = vpack.c.bf16 %v1152, %v1152
  %v1169 = vpack.c.bf16 %v1153, %v1153
  %v1170 = vpack.c.bf16 %v1154, %v1154
  %v1171 = vpack.c.bf16 %v1155, %v1155
  %v1172 = vpack.c.bf16 %v1156, %v1156
  %v1173 = vpack.c.bf16 %v1157, %v1157
  %vm1174 = vcmask 519168
  %1175 = vst.msk [vmem:[%s5] sm:$0xf] %vm1174, %v1158
  %1176 = vst.msk [vmem:[%s5 + $0x4] sm:$0xf] %vm1174, %v1159
  %1177 = vst.msk [vmem:[%s5 + $0x8] sm:$0xf] %vm1174, %v1160
  %1178 = vst.msk [vmem:[%s5 + $0xc] sm:$0xf] %vm1174, %v1161
  %1179 = vst.msk [vmem:[%s5 + $0x10] sm:$0xf] %vm1174, %v1162
  %1180 = vst.msk [vmem:[%s5 + $0x14] sm:$0xf] %vm1174, %v1163
  %1181 = vst.msk [vmem:[%s5 + $0x18] sm:$0xf] %vm1174, %v1164
  %1182 = vst.msk [vmem:[%s5 + $0x1c] sm:$0xf] %vm1174, %v1165
  %1183 = vst.msk [vmem:[%s5 + $0x20] sm:$0xf] %vm1174, %v1166
  %1184 = vst.msk [vmem:[%s5 + $0x24] sm:$0xf] %vm1174, %v1167
  %1185 = vst.msk [vmem:[%s5 + $0x28] sm:$0xf] %vm1174, %v1168
  %1186 = vst.msk [vmem:[%s5 + $0x2c] sm:$0xf] %vm1174, %v1169
  %1187 = vst.msk [vmem:[%s5 + $0x30] sm:$0xf] %vm1174, %v1170
  %1188 = vst.msk [vmem:[%s5 + $0x34] sm:$0xf] %vm1174, %v1171
  %1189 = vst.msk [vmem:[%s5 + $0x38] sm:$0xf] %vm1174, %v1172
  %1190 = vst.msk [vmem:[%s5 + $0x3c] sm:$0xf] %vm1174, %v1173
  %1191 = vrot.lane.b32.xlu0 %v1124, 64
  %v1192 = vpop.permute.xlu0 %1191
  %v1194 = vadd.f32 %v1106, %v1192
  %v1195 = vadd.f32 %v1107, %v1192
  %v1196 = vadd.f32 %v1108, %v1192
  %v1197 = vadd.f32 %v1109, %v1192
  %v1198 = vadd.f32 %v1110, %v1192
  %v1199 = vadd.f32 %v1111, %v1192
  %v1200 = vadd.f32 %v1112, %v1192
  %v1201 = vadd.f32 %v1113, %v1192
  %v1202 = vadd.f32 %v1114, %v1192
  %v1203 = vadd.f32 %v1115, %v1192
  %v1204 = vadd.f32 %v1116, %v1192
  %v1205 = vadd.f32 %v1117, %v1192
  %v1206 = vadd.f32 %v1118, %v1192
  %v1207 = vadd.f32 %v1119, %v1192
  %v1208 = vadd.f32 %v1120, %v1192
  %v1209 = vadd.f32 %v1121, %v1192
  %v1210 = vmax.f32 %v1194, 0.0
  %v1211 = vmax.f32 %v1195, 0.0
  %v1212 = vmax.f32 %v1196, 0.0
  %v1213 = vmax.f32 %v1197, 0.0
  %v1214 = vmax.f32 %v1198, 0.0
  %v1215 = vmax.f32 %v1199, 0.0
  %v1216 = vmax.f32 %v1200, 0.0
  %v1217 = vmax.f32 %v1201, 0.0
  %v1218 = vmax.f32 %v1202, 0.0
  %v1219 = vmax.f32 %v1203, 0.0
  %v1220 = vmax.f32 %v1204, 0.0
  %v1221 = vmax.f32 %v1205, 0.0
  %v1222 = vmax.f32 %v1206, 0.0
  %v1223 = vmax.f32 %v1207, 0.0
  %v1224 = vmax.f32 %v1208, 0.0
  %v1225 = vmax.f32 %v1209, 0.0
  %v1226 = vpack.c.bf16 %v1210, %v1210
  %v1227 = vpack.c.bf16 %v1211, %v1211
  %v1228 = vpack.c.bf16 %v1212, %v1212
  %v1229 = vpack.c.bf16 %v1213, %v1213
  %v1230 = vpack.c.bf16 %v1214, %v1214
  %v1231 = vpack.c.bf16 %v1215, %v1215
  %v1232 = vpack.c.bf16 %v1216, %v1216
  %v1233 = vpack.c.bf16 %v1217, %v1217
  %v1234 = vpack.c.bf16 %v1218, %v1218
  %v1235 = vpack.c.bf16 %v1219, %v1219
  %v1236 = vpack.c.bf16 %v1220, %v1220
  %v1237 = vpack.c.bf16 %v1221, %v1221
  %v1238 = vpack.c.bf16 %v1222, %v1222
  %v1239 = vpack.c.bf16 %v1223, %v1223
  %v1240 = vpack.c.bf16 %v1224, %v1224
  %v1241 = vpack.c.bf16 %v1225, %v1225
  %1258 = vrot.lane.b32.xlu0 %v1226, 64
  %v1259 = vpop.permute.xlu0 %1258
  %1260 = vrot.lane.b32.xlu0 %v1227, 64
  %v1261 = vpop.permute.xlu0 %1260
  %1262 = vrot.lane.b32.xlu0 %v1228, 64
  %v1263 = vpop.permute.xlu0 %1262
  %1264 = vrot.lane.b32.xlu0 %v1229, 64
  %v1265 = vpop.permute.xlu0 %1264
  %1266 = vrot.lane.b32.xlu0 %v1230, 64
  %v1267 = vpop.permute.xlu0 %1266
  %1268 = vrot.lane.b32.xlu0 %v1231, 64
  %v1269 = vpop.permute.xlu0 %1268
  %1270 = vrot.lane.b32.xlu0 %v1232, 64
  %v1271 = vpop.permute.xlu0 %1270
  %1272 = vrot.lane.b32.xlu0 %v1233, 64
  %v1273 = vpop.permute.xlu0 %1272
  %1274 = vrot.lane.b32.xlu0 %v1234, 64
  %v1275 = vpop.permute.xlu0 %1274
  %1276 = vrot.lane.b32.xlu0 %v1235, 64
  %v1277 = vpop.permute.xlu0 %1276
  %1278 = vrot.lane.b32.xlu0 %v1236, 64
  %v1279 = vpop.permute.xlu0 %1278
  %1280 = vrot.lane.b32.xlu0 %v1237, 64
  %v1281 = vpop.permute.xlu0 %1280
  %1282 = vrot.lane.b32.xlu0 %v1238, 64
  %v1283 = vpop.permute.xlu0 %1282
  %1284 = vrot.lane.b32.xlu0 %v1239, 64
  %v1285 = vpop.permute.xlu0 %1284
  %1286 = vrot.lane.b32.xlu0 %v1240, 64
  %v1287 = vpop.permute.xlu0 %1286
  %1288 = vrot.lane.b32.xlu0 %v1241, 64
  %v1289 = vpop.permute.xlu0 %1288
  %vm1306 = vcmask 1043968
  %1307 = vst.msk [vmem:[%s5] sm:$0xf] %vm1306, %v1259
  %1308 = vst.msk [vmem:[%s5 + $0x4] sm:$0xf] %vm1306, %v1261
  %1309 = vst.msk [vmem:[%s5 + $0x8] sm:$0xf] %vm1306, %v1263
  %1310 = vst.msk [vmem:[%s5 + $0xc] sm:$0xf] %vm1306, %v1265
  %1311 = vst.msk [vmem:[%s5 + $0x10] sm:$0xf] %vm1306, %v1267
  %1312 = vst.msk [vmem:[%s5 + $0x14] sm:$0xf] %vm1306, %v1269
  %1313 = vst.msk [vmem:[%s5 + $0x18] sm:$0xf] %vm1306, %v1271
  %1314 = vst.msk [vmem:[%s5 + $0x1c] sm:$0xf] %vm1306, %v1273
  %1315 = vst.msk [vmem:[%s5 + $0x20] sm:$0xf] %vm1306, %v1275
  %1316 = vst.msk [vmem:[%s5 + $0x24] sm:$0xf] %vm1306, %v1277
  %1317 = vst.msk [vmem:[%s5 + $0x28] sm:$0xf] %vm1306, %v1279
  %1318 = vst.msk [vmem:[%s5 + $0x2c] sm:$0xf] %vm1306, %v1281
  %1319 = vst.msk [vmem:[%s5 + $0x30] sm:$0xf] %vm1306, %v1283
  %1320 = vst.msk [vmem:[%s5 + $0x34] sm:$0xf] %vm1306, %v1285
  %1321 = vst.msk [vmem:[%s5 + $0x38] sm:$0xf] %vm1306, %v1287
  %1322 = vst.msk [vmem:[%s5 + $0x3c] sm:$0xf] %vm1306, %v1289
  // Predicated region
  $region22: #{orbit_gnn_forward.2} parent=0 // pred_check
    _
  $region23: #{orbit_gnn_forward.2} parent=0 // pred_check_branch
    %1324 = sbr.rel (0) target = $region25
  $region24: #{orbit_gnn_forward.2} parent=0 // pred_region
    _
  $region25: #{orbit_gnn_forward.2} parent=0 // pred_fallthru
    _
  // Predicated region
  $region26: #{orbit_gnn_forward.2} parent=0 // pred_check
    _
  $region27: #{orbit_gnn_forward.2} parent=0 // pred_check_branch
    %1326 = sbr.rel (0) target = $region29
  $region28: #{orbit_gnn_forward.2} parent=0 // pred_region
    _
  $region29: #{orbit_gnn_forward.2} parent=0 // pred_fallthru
    _

// kernel: orbit_gnn_forward.3
$region0: #{orbit_gnn_forward.3}
  #allocation0 [shape = 'u32[]', space=smem, size = 0x4, offset = 0x4, fixed_abs, tag = 'smem constant byte address 0x4 - core index']
  #allocation1 [shape = 'u32[72,128]{1,0:T(1,128)}', space=vmem, size = 0x9000, scoped, tag = 'internal scratch']
  %s0 = inlined_call_operand.vmem [shape: s8[128,128], index: 0, kind: input, shape index: {}]
  %s1 = inlined_call_operand.vmem [shape: bf16[2,128,128], index: 1, kind: input, shape index: {}]
  %s2 = inlined_call_operand.vmem [shape: f32[2,1,128], index: 2, kind: input, shape index: {}]
  %s3 = inlined_call_operand.vmem [shape: f32[128,2], index: 3, kind: input, shape index: {}]
  %s4 = inlined_call_operand.vmem [shape: f32[1,64], index: 4, kind: input, shape index: {}]
  %s5 = inlined_call_operand.vmem [shape: bf16[64,64], index: 5, kind: input, shape index: {}]
  %s6 = inlined_call_operand.vmem [shape: f32[1,64], index: 6, kind: input, shape index: {}]
  %s7 = inlined_call_operand.vmem [shape: bf16[64,128], index: 7, kind: input, shape index: {}]
  %s8 = inlined_call_operand.vmem [shape: f32[1,128], index: 8, kind: input, shape index: {}]
  %s9 = inlined_call_operand.vmem [shape: f32[128,128], index: 9, kind: output, shape index: {}]
  %s10 = sld [smem:[#allocation0]]
  $region46: #{orbit_gnn_forward.3} parent=0
    _
  %s12 = ssub.s32 1, %s10
  %s13 = scalar_select 0, %s12, %s10
  // Predicated region
  $region2: #{orbit_gnn_forward.3} parent=0 // pred_check
    _
  $region3: #{orbit_gnn_forward.3} parent=0 // pred_check_branch
    %15 = sbr.rel (0) target = $region5
  $region4: #{orbit_gnn_forward.3} parent=0 // pred_region
    _
  $region5: #{orbit_gnn_forward.3} parent=0 // pred_fallthru
    _
  // Predicated region
  $region6: #{orbit_gnn_forward.3} parent=0 // pred_check
    _
  $region7: #{orbit_gnn_forward.3} parent=0 // pred_check_branch
    %17 = sbr.rel (0) target = $region9
  $region8: #{orbit_gnn_forward.3} parent=0 // pred_region
    _
  $region9: #{orbit_gnn_forward.3} parent=0 // pred_fallthru
    _
  // Predicated region
  $region10: #{orbit_gnn_forward.3} parent=0 // pred_check
    _
  $region11: #{orbit_gnn_forward.3} parent=0 // pred_check_branch
    %19 = sbr.rel (0) target = $region13
  $region12: #{orbit_gnn_forward.3} parent=0 // pred_region
    _
  $region13: #{orbit_gnn_forward.3} parent=0 // pred_fallthru
    _
  // Predicated region
  $region14: #{orbit_gnn_forward.3} parent=0 // pred_check
    _
  $region15: #{orbit_gnn_forward.3} parent=0 // pred_check_branch
    %21 = sbr.rel (0) target = $region17
  $region16: #{orbit_gnn_forward.3} parent=0 // pred_region
    _
  $region17: #{orbit_gnn_forward.3} parent=0 // pred_fallthru
    _
  // Predicated region
  $region18: #{orbit_gnn_forward.3} parent=0 // pred_check
    _
  $region19: #{orbit_gnn_forward.3} parent=0 // pred_check_branch
    %23 = sbr.rel (0) target = $region21
  $region20: #{orbit_gnn_forward.3} parent=0 // pred_region
    _
  $region21: #{orbit_gnn_forward.3} parent=0 // pred_fallthru
    _
  // Predicated region
  $region22: #{orbit_gnn_forward.3} parent=0 // pred_check
    _
  $region23: #{orbit_gnn_forward.3} parent=0 // pred_check_branch
    %25 = sbr.rel (0) target = $region25
  $region24: #{orbit_gnn_forward.3} parent=0 // pred_region
    _
  $region25: #{orbit_gnn_forward.3} parent=0 // pred_fallthru
    _
  // Predicated region
  $region26: #{orbit_gnn_forward.3} parent=0 // pred_check
    _
  $region27: #{orbit_gnn_forward.3} parent=0 // pred_check_branch
    %27 = sbr.rel (0) target = $region29
  $region28: #{orbit_gnn_forward.3} parent=0 // pred_region
    _
  $region29: #{orbit_gnn_forward.3} parent=0 // pred_fallthru
    _
  // Predicated region
  $region30: #{orbit_gnn_forward.3} parent=0 // pred_check
    _
  $region31: #{orbit_gnn_forward.3} parent=0 // pred_check_branch
    %29 = sbr.rel (0) target = $region33
  $region32: #{orbit_gnn_forward.3} parent=0 // pred_region
    _
  $region33: #{orbit_gnn_forward.3} parent=0 // pred_fallthru
    _
  // Predicated region
  $region34: #{orbit_gnn_forward.3} parent=0 // pred_check
    _
  $region35: #{orbit_gnn_forward.3} parent=0 // pred_check_branch
    %31 = sbr.rel (0) target = $region37
  $region36: #{orbit_gnn_forward.3} parent=0 // pred_region
    _
  $region37: #{orbit_gnn_forward.3} parent=0 // pred_fallthru
    _
  %v35 = vld [vmem:[%s0] sm:$0x3]
  %v36 = vld [vmem:[%s0 + $0x2] sm:$0x3]
  %v37 = vld [vmem:[%s0 + $0x4] sm:$0x3]
  %v38 = vld [vmem:[%s0 + $0x6] sm:$0x3]
  %v39 = vld [vmem:[%s0 + $0x8] sm:$0x3]
  %v40 = vld [vmem:[%s0 + $0xa] sm:$0x3]
  %v41 = vld [vmem:[%s0 + $0xc] sm:$0x3]
  %v42 = vld [vmem:[%s0 + $0xe] sm:$0x3]
  %v43 = vld [vmem:[%s0 + $0x10] sm:$0x3]
  %v44 = vld [vmem:[%s0 + $0x12] sm:$0x3]
  %v45 = vld [vmem:[%s0 + $0x14] sm:$0x3]
  %v46 = vld [vmem:[%s0 + $0x16] sm:$0x3]
  %v47 = vld [vmem:[%s0 + $0x18] sm:$0x3]
  %v48 = vld [vmem:[%s0 + $0x1a] sm:$0x3]
  %v49 = vld [vmem:[%s0 + $0x1c] sm:$0x3]
  %v50 = vld [vmem:[%s0 + $0x1e] sm:$0x3]
  %vm51 = vnez %v35
  %vm52 = vnez %v36
  %vm53 = vnez %v37
  %vm54 = vnez %v38
  %vm55 = vnez %v39
  %vm56 = vnez %v40
  %vm57 = vnez %v41
  %vm58 = vnez %v42
  %vm59 = vnez %v43
  %vm60 = vnez %v44
  %vm61 = vnez %v45
  %vm62 = vnez %v46
  %vm63 = vnez %v47
  %vm64 = vnez %v48
  %vm65 = vnez %v49
  %vm66 = vnez %v50
  %v67 = vld [vmem:[%s3] sm:$0xff]
  %v68 = vld [vmem:[%s3 + $0x8] sm:$0xff]
  %v69 = vld [vmem:[%s3 + $0x10] sm:$0xff]
  %v70 = vld [vmem:[%s3 + $0x18] sm:$0xff]
  %v71 = vld [vmem:[%s3 + $0x20] sm:$0xff]
  %v72 = vld [vmem:[%s3 + $0x28] sm:$0xff]
  %v73 = vld [vmem:[%s3 + $0x30] sm:$0xff]
  %v74 = vld [vmem:[%s3 + $0x38] sm:$0xff]
  %v75 = vld [vmem:[%s3 + $0x40] sm:$0xff]
  %v76 = vld [vmem:[%s3 + $0x48] sm:$0xff]
  %v77 = vld [vmem:[%s3 + $0x50] sm:$0xff]
  %v78 = vld [vmem:[%s3 + $0x58] sm:$0xff]
  %v79 = vld [vmem:[%s3 + $0x60] sm:$0xff]
  %v80 = vld [vmem:[%s3 + $0x68] sm:$0xff]
  %v81 = vld [vmem:[%s3 + $0x70] sm:$0xff]
  %v82 = vld [vmem:[%s3 + $0x78] sm:$0xff]
  %v83 = vld [vmem:[%s2] sm:$0x1]
  %85 = vset.pattern.permute.xlu0 0
  %86 = vperm.xlu0 %85, %v67
  %v87 = vpop.permute.xlu0 %86
  %90 = vset.pattern.permute.xlu0 0
  %91 = vperm.xlu0 %90, %v68
  %v92 = vpop.permute.xlu0 %91
  %95 = vset.pattern.permute.xlu0 0
  %96 = vperm.xlu0 %95, %v69
  %v97 = vpop.permute.xlu0 %96
  %100 = vset.pattern.permute.xlu0 0
  %101 = vperm.xlu0 %100, %v70
  %v102 = vpop.permute.xlu0 %101
  %105 = vset.pattern.permute.xlu0 0
  %106 = vperm.xlu0 %105, %v71
  %v107 = vpop.permute.xlu0 %106
  %110 = vset.pattern.permute.xlu0 0
  %111 = vperm.xlu0 %110, %v72
  %v112 = vpop.permute.xlu0 %111
  %115 = vset.pattern.permute.xlu0 0
  %116 = vperm.xlu0 %115, %v73
  %v117 = vpop.permute.xlu0 %116
  %120 = vset.pattern.permute.xlu0 0
  %121 = vperm.xlu0 %120, %v74
  %v122 = vpop.permute.xlu0 %121
  %125 = vset.pattern.permute.xlu0 0
  %126 = vperm.xlu0 %125, %v75
  %v127 = vpop.permute.xlu0 %126
  %130 = vset.pattern.permute.xlu0 0
  %131 = vperm.xlu0 %130, %v76
  %v132 = vpop.permute.xlu0 %131
  %135 = vset.pattern.permute.xlu0 0
  %136 = vperm.xlu0 %135, %v77
  %v137 = vpop.permute.xlu0 %136
  %140 = vset.pattern.permute.xlu0 0
  %141 = vperm.xlu0 %140, %v78
  %v142 = vpop.permute.xlu0 %141
  %145 = vset.pattern.permute.xlu0 0
  %146 = vperm.xlu0 %145, %v79
  %v147 = vpop.permute.xlu0 %146
  %150 = vset.pattern.permute.xlu0 0
  %151 = vperm.xlu0 %150, %v80
  %v152 = vpop.permute.xlu0 %151
  %155 = vset.pattern.permute.xlu0 0
  %156 = vperm.xlu0 %155, %v81
  %v157 = vpop.permute.xlu0 %156
  %160 = vset.pattern.permute.xlu0 0
  %161 = vperm.xlu0 %160, %v82
  %v162 = vpop.permute.xlu0 %161
  %v165 = vperm.slane %v83, 0
  %v167 = vadd.f32 %v87, %v165
  %v168 = vadd.f32 %v92, %v165
  %v169 = vadd.f32 %v97, %v165
  %v170 = vadd.f32 %v102, %v165
  %v171 = vadd.f32 %v107, %v165
  %v172 = vadd.f32 %v112, %v165
  %v173 = vadd.f32 %v117, %v165
  %v174 = vadd.f32 %v122, %v165
  %v175 = vadd.f32 %v127, %v165
  %v176 = vadd.f32 %v132, %v165
  %v177 = vadd.f32 %v137, %v165
  %v178 = vadd.f32 %v142, %v165
  %v179 = vadd.f32 %v147, %v165
  %v180 = vadd.f32 %v152, %v165
  %v181 = vadd.f32 %v157, %v165
  %v182 = vadd.f32 %v162, %v165
  %v183 = vmul.f32 %v167, 0.2
  %v184 = vmul.f32 %v168, 0.2
  %v185 = vmul.f32 %v169, 0.2
  %v186 = vmul.f32 %v170, 0.2
  %v187 = vmul.f32 %v171, 0.2
  %v188 = vmul.f32 %v172, 0.2
  %v189 = vmul.f32 %v173, 0.2
  %v190 = vmul.f32 %v174, 0.2
  %v191 = vmul.f32 %v175, 0.2
  %v192 = vmul.f32 %v176, 0.2
  %v193 = vmul.f32 %v177, 0.2
  %v194 = vmul.f32 %v178, 0.2
  %v195 = vmul.f32 %v179, 0.2
  %v196 = vmul.f32 %v180, 0.2
  %v197 = vmul.f32 %v181, 0.2
  %v198 = vmul.f32 %v182, 0.2
  %v199 = vmax.f32 %v167, %v183
  %v200 = vmax.f32 %v168, %v184
  %v201 = vmax.f32 %v169, %v185
  %v202 = vmax.f32 %v170, %v186
  %v203 = vmax.f32 %v171, %v187
  %v204 = vmax.f32 %v172, %v188
  %v205 = vmax.f32 %v173, %v189
  %v206 = vmax.f32 %v174, %v190
  %v207 = vmax.f32 %v175, %v191
  %v208 = vmax.f32 %v176, %v192
  %v209 = vmax.f32 %v177, %v193
  %v210 = vmax.f32 %v178, %v194
  %v211 = vmax.f32 %v179, %v195
  %v212 = vmax.f32 %v180, %v196
  %v213 = vmax.f32 %v181, %v197
  %v214 = vmax.f32 %v182, %v198
  %v215 = vsel %vm51, 16843009, 0
  %v216 = vsel %vm52, 16843009, 0
  %v217 = vsel %vm53, 16843009, 0
  %v218 = vsel %vm54, 16843009, 0
  %v219 = vsel %vm55, 16843009, 0
  %v220 = vsel %vm56, 16843009, 0
  %v221 = vsel %vm57, 16843009, 0
  %v222 = vsel %vm58, 16843009, 0
  %v223 = vsel %vm59, 16843009, 0
  %v224 = vsel %vm60, 16843009, 0
  %v225 = vsel %vm61, 16843009, 0
  %v226 = vsel %vm62, 16843009, 0
  %v227 = vsel %vm63, 16843009, 0
  %v228 = vsel %vm64, 16843009, 0
  %v229 = vsel %vm65, 16843009, 0
  %v230 = vsel %vm66, 16843009, 0
  %v231 = vunpack.c.0.s8 %v215
  %v232 = vunpack.c.0.s8 %v216
  %v233 = vunpack.c.0.s8 %v217
  %v234 = vunpack.c.0.s8 %v218
  %v235 = vunpack.c.0.s8 %v219
  %v236 = vunpack.c.0.s8 %v220
  %v237 = vunpack.c.0.s8 %v221
  %v238 = vunpack.c.0.s8 %v222
  %v239 = vunpack.c.0.s8 %v223
  %v240 = vunpack.c.0.s8 %v224
  %v241 = vunpack.c.0.s8 %v225
  %v242 = vunpack.c.0.s8 %v226
  %v243 = vunpack.c.0.s8 %v227
  %v244 = vunpack.c.0.s8 %v228
  %v245 = vunpack.c.0.s8 %v229
  %v246 = vunpack.c.0.s8 %v230
  %vm247 = vcmp.ne.s32.totalorder %v231, 0
  %vm248 = vcmp.ne.s32.totalorder %v232, 0
  %vm249 = vcmp.ne.s32.totalorder %v233, 0
  %vm250 = vcmp.ne.s32.totalorder %v234, 0
  %vm251 = vcmp.ne.s32.totalorder %v235, 0
  %vm252 = vcmp.ne.s32.totalorder %v236, 0
  %vm253 = vcmp.ne.s32.totalorder %v237, 0
  %vm254 = vcmp.ne.s32.totalorder %v238, 0
  %vm255 = vcmp.ne.s32.totalorder %v239, 0
  %vm256 = vcmp.ne.s32.totalorder %v240, 0
  %vm257 = vcmp.ne.s32.totalorder %v241, 0
  %vm258 = vcmp.ne.s32.totalorder %v242, 0
  %vm259 = vcmp.ne.s32.totalorder %v243, 0
  %vm260 = vcmp.ne.s32.totalorder %v244, 0
  %vm261 = vcmp.ne.s32.totalorder %v245, 0
  %vm262 = vcmp.ne.s32.totalorder %v246, 0
  %v263 = vsel %vm247, %v199, -1e+30
  %v264 = vsel %vm248, %v200, -1e+30
  %v265 = vsel %vm249, %v201, -1e+30
  %v266 = vsel %vm250, %v202, -1e+30
  %v267 = vsel %vm251, %v203, -1e+30
  %v268 = vsel %vm252, %v204, -1e+30
  %v269 = vsel %vm253, %v205, -1e+30
  %v270 = vsel %vm254, %v206, -1e+30
  %v271 = vsel %vm255, %v207, -1e+30
  %v272 = vsel %vm256, %v208, -1e+30
  %v273 = vsel %vm257, %v209, -1e+30
  %v274 = vsel %vm258, %v210, -1e+30
  %v275 = vsel %vm259, %v211, -1e+30
  %v276 = vsel %vm260, %v212, -1e+30
  %v277 = vsel %vm261, %v213, -1e+30
  %v278 = vsel %vm262, %v214, -1e+30
  %279 = vmax.xlane.f32.xlu0 %v263
  %v280 = vpop.xlane.xlu0 %279
  %281 = vmax.xlane.f32.xlu0 %v264
  %v282 = vpop.xlane.xlu0 %281
  %283 = vmax.xlane.f32.xlu0 %v265
  %v284 = vpop.xlane.xlu0 %283
  %285 = vmax.xlane.f32.xlu0 %v266
  %v286 = vpop.xlane.xlu0 %285
  %287 = vmax.xlane.f32.xlu0 %v267
  %v288 = vpop.xlane.xlu0 %287
  %289 = vmax.xlane.f32.xlu0 %v268
  %v290 = vpop.xlane.xlu0 %289
  %291 = vmax.xlane.f32.xlu0 %v269
  %v292 = vpop.xlane.xlu0 %291
  %293 = vmax.xlane.f32.xlu0 %v270
  %v294 = vpop.xlane.xlu0 %293
  %295 = vmax.xlane.f32.xlu0 %v271
  %v296 = vpop.xlane.xlu0 %295
  %297 = vmax.xlane.f32.xlu0 %v272
  %v298 = vpop.xlane.xlu0 %297
  %299 = vmax.xlane.f32.xlu0 %v273
  %v300 = vpop.xlane.xlu0 %299
  %301 = vmax.xlane.f32.xlu0 %v274
  %v302 = vpop.xlane.xlu0 %301
  %303 = vmax.xlane.f32.xlu0 %v275
  %v304 = vpop.xlane.xlu0 %303
  %305 = vmax.xlane.f32.xlu0 %v276
  %v306 = vpop.xlane.xlu0 %305
  %307 = vmax.xlane.f32.xlu0 %v277
  %v308 = vpop.xlane.xlu0 %307
  %309 = vmax.xlane.f32.xlu0 %v278
  %v310 = vpop.xlane.xlu0 %309
  %v311 = vmax.f32 %v280, 0.0
  %v312 = vmax.f32 %v282, 0.0
  %v313 = vmax.f32 %v284, 0.0
  %v314 = vmax.f32 %v286, 0.0
  %v315 = vmax.f32 %v288, 0.0
  %v316 = vmax.f32 %v290, 0.0
  %v317 = vmax.f32 %v292, 0.0
  %v318 = vmax.f32 %v294, 0.0
  %v319 = vmax.f32 %v296, 0.0
  %v320 = vmax.f32 %v298, 0.0
  %v321 = vmax.f32 %v300, 0.0
  %v322 = vmax.f32 %v302, 0.0
  %v323 = vmax.f32 %v304, 0.0
  %v324 = vmax.f32 %v306, 0.0
  %v325 = vmax.f32 %v308, 0.0
  %v326 = vmax.f32 %v310, 0.0
  %v327 = vsub.f32 %v263, %v311
  %v328 = vsub.f32 %v264, %v312
  %v329 = vsub.f32 %v265, %v313
  %v330 = vsub.f32 %v266, %v314
  %v331 = vsub.f32 %v267, %v315
  %v332 = vsub.f32 %v268, %v316
  %v333 = vsub.f32 %v269, %v317
  %v334 = vsub.f32 %v270, %v318
  %v335 = vsub.f32 %v271, %v319
  %v336 = vsub.f32 %v272, %v320
  %v337 = vsub.f32 %v273, %v321
  %v338 = vsub.f32 %v274, %v322
  %v339 = vsub.f32 %v275, %v323
  %v340 = vsub.f32 %v276, %v324
  %v341 = vsub.f32 %v277, %v325
  %v342 = vsub.f32 %v278, %v326
  %v343 = vmul.f32 %v327, 1.442695
  %v344 = vpow.pop %v343
  %v345 = vmul.f32 %v328, 1.442695
  %v346 = vpow.pop %v345
  %v347 = vmul.f32 %v329, 1.442695
  %v348 = vpow.pop %v347
  %v349 = vmul.f32 %v330, 1.442695
  %v350 = vpow.pop %v349
  %v351 = vmul.f32 %v331, 1.442695
  %v352 = vpow.pop %v351
  %v353 = vmul.f32 %v332, 1.442695
  %v354 = vpow.pop %v353
  %v355 = vmul.f32 %v333, 1.442695
  %v356 = vpow.pop %v355
  %v357 = vmul.f32 %v334, 1.442695
  %v358 = vpow.pop %v357
  %v359 = vmul.f32 %v335, 1.442695
  %v360 = vpow.pop %v359
  %v361 = vmul.f32 %v336, 1.442695
  %v362 = vpow.pop %v361
  %v363 = vmul.f32 %v337, 1.442695
  %v364 = vpow.pop %v363
  %v365 = vmul.f32 %v338, 1.442695
  %v366 = vpow.pop %v365
  %v367 = vmul.f32 %v339, 1.442695
  %v368 = vpow.pop %v367
  %v369 = vmul.f32 %v340, 1.442695
  %v370 = vpow.pop %v369
  %v371 = vmul.f32 %v341, 1.442695
  %v372 = vpow.pop %v371
  %v373 = vmul.f32 %v342, 1.442695
  %v374 = vpow.pop %v373
  %v375 = vpack.c.bf16 %v346, %v344
  %v376 = vpack.c.bf16 %v350, %v348
  %v377 = vpack.c.bf16 %v354, %v352
  %v378 = vpack.c.bf16 %v358, %v356
  %v379 = vpack.c.bf16 %v362, %v360
  %v380 = vpack.c.bf16 %v366, %v364
  %v381 = vpack.c.bf16 %v370, %v368
  %v382 = vpack.c.bf16 %v374, %v372
  %v383 = vld [vmem:[%s1] sm:$0xf]
  %v384 = vld [vmem:[%s1 + $0x4] sm:$0xf]
  %v385 = vld [vmem:[%s1 + $0x8] sm:$0xf]
  %v386 = vld [vmem:[%s1 + $0xc] sm:$0xf]
  %v387 = vld [vmem:[%s1 + $0x10] sm:$0xf]
  %v388 = vld [vmem:[%s1 + $0x14] sm:$0xf]
  %v389 = vld [vmem:[%s1 + $0x18] sm:$0xf]
  %v390 = vld [vmem:[%s1 + $0x1c] sm:$0xf]
  %v391 = vld [vmem:[%s1 + $0x20] sm:$0xf]
  %v392 = vld [vmem:[%s1 + $0x24] sm:$0xf]
  %v393 = vld [vmem:[%s1 + $0x28] sm:$0xf]
  %v394 = vld [vmem:[%s1 + $0x2c] sm:$0xf]
  %v395 = vld [vmem:[%s1 + $0x30] sm:$0xf]
  %v396 = vld [vmem:[%s1 + $0x34] sm:$0xf]
  %v397 = vld [vmem:[%s1 + $0x38] sm:$0xf]
  %v398 = vld [vmem:[%s1 + $0x3c] sm:$0xf]
  %v415 = vunpack.c.l.b16 %v383
  %v416 = vunpack.c.l.b16 %v384
  %v417 = vunpack.c.l.b16 %v385
  %v418 = vunpack.c.l.b16 %v386
  %v419 = vunpack.c.l.b16 %v387
  %v420 = vunpack.c.l.b16 %v388
  %v421 = vunpack.c.l.b16 %v389
  %v422 = vunpack.c.l.b16 %v390
  %v423 = vunpack.c.l.b16 %v391
  %v424 = vunpack.c.l.b16 %v392
  %v425 = vunpack.c.l.b16 %v393
  %v426 = vunpack.c.l.b16 %v394
  %v427 = vunpack.c.l.b16 %v395
  %v428 = vunpack.c.l.b16 %v396
  %v429 = vunpack.c.l.b16 %v397
  %v430 = vunpack.c.l.b16 %v398
  %v431 = vpack.c.b16 %v416, %v415
  %v432 = vpack.c.b16 %v418, %v417
  %v433 = vpack.c.b16 %v420, %v419
  %v434 = vpack.c.b16 %v422, %v421
  %v435 = vpack.c.b16 %v424, %v423
  %v436 = vpack.c.b16 %v426, %v425
  %v437 = vpack.c.b16 %v428, %v427
  %v438 = vpack.c.b16 %v430, %v429
  %447 = vmatpush.bf16.msra.mxu0 %v438
  %448 = vmatpush.bf16.msra.mxu0 %v437
  %449 = vmatpush.bf16.msra.mxu0 %v436
  %450 = vmatpush.bf16.msra.mxu0 %v435
  %451 = vmatpush.bf16.msra.mxu0 %v434
  %452 = vmatpush.bf16.msra.mxu0 %v433
  %453 = vmatpush.bf16.msra.mxu0 %v432
  %454 = vmatpush.bf16.msra.mxu0 %v431
  %455 = vmatmul.bf16.gmra.mxu0 %v375
  %v456 = vpop.f32.mrf.mxu0
  %v457 = vadd.f32 0.0, %v456
  %v458 = vpop.f32.mrf.mxu0
  %v459 = vadd.f32 0.0, %v458
  %460 = vmatmul.bf16.gmra.mxu0 %v376
  %v461 = vpop.f32.mrf.mxu0
  %v462 = vadd.f32 0.0, %v461
  %v463 = vpop.f32.mrf.mxu0
  %v464 = vadd.f32 0.0, %v463
  %465 = vmatmul.bf16.gmra.mxu0 %v377
  %v466 = vpop.f32.mrf.mxu0
  %v467 = vadd.f32 0.0, %v466
  %v468 = vpop.f32.mrf.mxu0
  %v469 = vadd.f32 0.0, %v468
  %470 = vmatmul.bf16.gmra.mxu0 %v378
  %v471 = vpop.f32.mrf.mxu0
  %v472 = vadd.f32 0.0, %v471
  %v473 = vpop.f32.mrf.mxu0
  %v474 = vadd.f32 0.0, %v473
  %475 = vmatmul.bf16.gmra.mxu0 %v379
  %v476 = vpop.f32.mrf.mxu0
  %v477 = vadd.f32 0.0, %v476
  %v478 = vpop.f32.mrf.mxu0
  %v479 = vadd.f32 0.0, %v478
  %480 = vmatmul.bf16.gmra.mxu0 %v380
  %v481 = vpop.f32.mrf.mxu0
  %v482 = vadd.f32 0.0, %v481
  %v483 = vpop.f32.mrf.mxu0
  %v484 = vadd.f32 0.0, %v483
  %485 = vmatmul.bf16.gmra.mxu0 %v381
  %v486 = vpop.f32.mrf.mxu0
  %v487 = vadd.f32 0.0, %v486
  %v488 = vpop.f32.mrf.mxu0
  %v489 = vadd.f32 0.0, %v488
  %490 = vmatmul.bf16.gmra.mxu0 %v382
  %v491 = vpop.f32.mrf.mxu0
  %v492 = vadd.f32 0.0, %v491
  %v493 = vpop.f32.mrf.mxu0
  %v494 = vadd.f32 0.0, %v493
  %495 = vdwg.mxu0
  %vm496 = vcmp.gt.f32.partialorder %v457, 0.0
  %vm497 = vcmp.gt.f32.partialorder %v459, 0.0
  %vm498 = vcmp.gt.f32.partialorder %v462, 0.0
  %vm499 = vcmp.gt.f32.partialorder %v464, 0.0
  %vm500 = vcmp.gt.f32.partialorder %v467, 0.0
  %vm501 = vcmp.gt.f32.partialorder %v469, 0.0
  %vm502 = vcmp.gt.f32.partialorder %v472, 0.0
  %vm503 = vcmp.gt.f32.partialorder %v474, 0.0
  %vm504 = vcmp.gt.f32.partialorder %v477, 0.0
  %vm505 = vcmp.gt.f32.partialorder %v479, 0.0
  %vm506 = vcmp.gt.f32.partialorder %v482, 0.0
  %vm507 = vcmp.gt.f32.partialorder %v484, 0.0
  %vm508 = vcmp.gt.f32.partialorder %v487, 0.0
  %vm509 = vcmp.gt.f32.partialorder %v489, 0.0
  %vm510 = vcmp.gt.f32.partialorder %v492, 0.0
  %vm511 = vcmp.gt.f32.partialorder %v494, 0.0
  %v512 = vsel %vm496, %v457, 1.0
  %v513 = vsel %vm497, %v459, 1.0
  %v514 = vsel %vm498, %v462, 1.0
  %v515 = vsel %vm499, %v464, 1.0
  %v516 = vsel %vm500, %v467, 1.0
  %v517 = vsel %vm501, %v469, 1.0
  %v518 = vsel %vm502, %v472, 1.0
  %v519 = vsel %vm503, %v474, 1.0
  %v520 = vsel %vm504, %v477, 1.0
  %v521 = vsel %vm505, %v479, 1.0
  %v522 = vsel %vm506, %v482, 1.0
  %v523 = vsel %vm507, %v484, 1.0
  %v524 = vsel %vm508, %v487, 1.0
  %v525 = vsel %vm509, %v489, 1.0
  %v526 = vsel %vm510, %v492, 1.0
  %v527 = vsel %vm511, %v494, 1.0
  %v528 = vrcp.pop %v512
  %v529 = vrcp.pop %v513
  %v530 = vrcp.pop %v514
  %v531 = vrcp.pop %v515
  %v532 = vrcp.pop %v516
  %v533 = vrcp.pop %v517
  %v534 = vrcp.pop %v518
  %v535 = vrcp.pop %v519
  %v536 = vrcp.pop %v520
  %v537 = vrcp.pop %v521
  %v538 = vrcp.pop %v522
  %v539 = vrcp.pop %v523
  %v540 = vrcp.pop %v524
  %v541 = vrcp.pop %v525
  %v542 = vrcp.pop %v526
  %v543 = vrcp.pop %v527
  %545 = vset.pattern.permute.xlu0 64
  %546 = vperm.xlu0 %545, %v528
  %v547 = vpop.permute.xlu0 %546
  %550 = vset.pattern.permute.xlu0 64
  %551 = vperm.xlu0 %550, %v529
  %v552 = vpop.permute.xlu0 %551
  %555 = vset.pattern.permute.xlu0 64
  %556 = vperm.xlu0 %555, %v530
  %v557 = vpop.permute.xlu0 %556
  %560 = vset.pattern.permute.xlu0 64
  %561 = vperm.xlu0 %560, %v531
  %v562 = vpop.permute.xlu0 %561
  %565 = vset.pattern.permute.xlu0 64
  %566 = vperm.xlu0 %565, %v532
  %v567 = vpop.permute.xlu0 %566
  %570 = vset.pattern.permute.xlu0 64
  %571 = vperm.xlu0 %570, %v533
  %v572 = vpop.permute.xlu0 %571
  %575 = vset.pattern.permute.xlu0 64
  %576 = vperm.xlu0 %575, %v534
  %v577 = vpop.permute.xlu0 %576
  %580 = vset.pattern.permute.xlu0 64
  %581 = vperm.xlu0 %580, %v535
  %v582 = vpop.permute.xlu0 %581
  %585 = vset.pattern.permute.xlu0 64
  %586 = vperm.xlu0 %585, %v536
  %v587 = vpop.permute.xlu0 %586
  %590 = vset.pattern.permute.xlu0 64
  %591 = vperm.xlu0 %590, %v537
  %v592 = vpop.permute.xlu0 %591
  %595 = vset.pattern.permute.xlu0 64
  %596 = vperm.xlu0 %595, %v538
  %v597 = vpop.permute.xlu0 %596
  %600 = vset.pattern.permute.xlu0 64
  %601 = vperm.xlu0 %600, %v539
  %v602 = vpop.permute.xlu0 %601
  %605 = vset.pattern.permute.xlu0 64
  %606 = vperm.xlu0 %605, %v540
  %v607 = vpop.permute.xlu0 %606
  %610 = vset.pattern.permute.xlu0 64
  %611 = vperm.xlu0 %610, %v541
  %v612 = vpop.permute.xlu0 %611
  %615 = vset.pattern.permute.xlu0 64
  %616 = vperm.xlu0 %615, %v542
  %v617 = vpop.permute.xlu0 %616
  %620 = vset.pattern.permute.xlu0 64
  %621 = vperm.xlu0 %620, %v543
  %v622 = vpop.permute.xlu0 %621
  %v624 = vmul.f32 %v457, %v547
  %v625 = vmul.f32 %v459, %v552
  %v626 = vmul.f32 %v462, %v557
  %v627 = vmul.f32 %v464, %v562
  %v628 = vmul.f32 %v467, %v567
  %v629 = vmul.f32 %v469, %v572
  %v630 = vmul.f32 %v472, %v577
  %v631 = vmul.f32 %v474, %v582
  %v632 = vmul.f32 %v477, %v587
  %v633 = vmul.f32 %v479, %v592
  %v634 = vmul.f32 %v482, %v597
  %v635 = vmul.f32 %v484, %v602
  %v636 = vmul.f32 %v487, %v607
  %v637 = vmul.f32 %v489, %v612
  %v638 = vmul.f32 %v492, %v617
  %v639 = vmul.f32 %v494, %v622
  %s640 = scalar_lea.vmem %s2, 1
  %v641 = vld [vmem:[%s640] sm:$0x1]
  %642 = vset.pattern.permute.xlu0 1
  %643 = vperm.xlu0 %642, %v67
  %v644 = vpop.permute.xlu0 %643
  %646 = vset.pattern.permute.xlu0 1
  %647 = vperm.xlu0 %646, %v68
  %v648 = vpop.permute.xlu0 %647
  %650 = vset.pattern.permute.xlu0 1
  %651 = vperm.xlu0 %650, %v69
  %v652 = vpop.permute.xlu0 %651
  %654 = vset.pattern.permute.xlu0 1
  %655 = vperm.xlu0 %654, %v70
  %v656 = vpop.permute.xlu0 %655
  %658 = vset.pattern.permute.xlu0 1
  %659 = vperm.xlu0 %658, %v71
  %v660 = vpop.permute.xlu0 %659
  %662 = vset.pattern.permute.xlu0 1
  %663 = vperm.xlu0 %662, %v72
  %v664 = vpop.permute.xlu0 %663
  %666 = vset.pattern.permute.xlu0 1
  %667 = vperm.xlu0 %666, %v73
  %v668 = vpop.permute.xlu0 %667
  %670 = vset.pattern.permute.xlu0 1
  %671 = vperm.xlu0 %670, %v74
  %v672 = vpop.permute.xlu0 %671
  %674 = vset.pattern.permute.xlu0 1
  %675 = vperm.xlu0 %674, %v75
  %v676 = vpop.permute.xlu0 %675
  %678 = vset.pattern.permute.xlu0 1
  %679 = vperm.xlu0 %678, %v76
  %v680 = vpop.permute.xlu0 %679
  %682 = vset.pattern.permute.xlu0 1
  %683 = vperm.xlu0 %682, %v77
  %v684 = vpop.permute.xlu0 %683
  %686 = vset.pattern.permute.xlu0 1
  %687 = vperm.xlu0 %686, %v78
  %v688 = vpop.permute.xlu0 %687
  %690 = vset.pattern.permute.xlu0 1
  %691 = vperm.xlu0 %690, %v79
  %v692 = vpop.permute.xlu0 %691
  %694 = vset.pattern.permute.xlu0 1
  %695 = vperm.xlu0 %694, %v80
  %v696 = vpop.permute.xlu0 %695
  %698 = vset.pattern.permute.xlu0 1
  %699 = vperm.xlu0 %698, %v81
  %v700 = vpop.permute.xlu0 %699
  %702 = vset.pattern.permute.xlu0 1
  %703 = vperm.xlu0 %702, %v82
  %v704 = vpop.permute.xlu0 %703
  %v707 = vperm.slane %v641, 0
  %v709 = vadd.f32 %v644, %v707
  %v710 = vadd.f32 %v648, %v707
  %v711 = vadd.f32 %v652, %v707
  %v712 = vadd.f32 %v656, %v707
  %v713 = vadd.f32 %v660, %v707
  %v714 = vadd.f32 %v664, %v707
  %v715 = vadd.f32 %v668, %v707
  %v716 = vadd.f32 %v672, %v707
  %v717 = vadd.f32 %v676, %v707
  %v718 = vadd.f32 %v680, %v707
  %v719 = vadd.f32 %v684, %v707
  %v720 = vadd.f32 %v688, %v707
  %v721 = vadd.f32 %v692, %v707
  %v722 = vadd.f32 %v696, %v707
  %v723 = vadd.f32 %v700, %v707
  %v724 = vadd.f32 %v704, %v707
  %v725 = vmul.f32 %v709, 0.2
  %v726 = vmul.f32 %v710, 0.2
  %v727 = vmul.f32 %v711, 0.2
  %v728 = vmul.f32 %v712, 0.2
  %v729 = vmul.f32 %v713, 0.2
  %v730 = vmul.f32 %v714, 0.2
  %v731 = vmul.f32 %v715, 0.2
  %v732 = vmul.f32 %v716, 0.2
  %v733 = vmul.f32 %v717, 0.2
  %v734 = vmul.f32 %v718, 0.2
  %v735 = vmul.f32 %v719, 0.2
  %v736 = vmul.f32 %v720, 0.2
  %v737 = vmul.f32 %v721, 0.2
  %v738 = vmul.f32 %v722, 0.2
  %v739 = vmul.f32 %v723, 0.2
  %v740 = vmul.f32 %v724, 0.2
  %v741 = vmax.f32 %v709, %v725
  %v742 = vmax.f32 %v710, %v726
  %v743 = vmax.f32 %v711, %v727
  %v744 = vmax.f32 %v712, %v728
  %v745 = vmax.f32 %v713, %v729
  %v746 = vmax.f32 %v714, %v730
  %v747 = vmax.f32 %v715, %v731
  %v748 = vmax.f32 %v716, %v732
  %v749 = vmax.f32 %v717, %v733
  %v750 = vmax.f32 %v718, %v734
  %v751 = vmax.f32 %v719, %v735
  %v752 = vmax.f32 %v720, %v736
  %v753 = vmax.f32 %v721, %v737
  %v754 = vmax.f32 %v722, %v738
  %v755 = vmax.f32 %v723, %v739
  %v756 = vmax.f32 %v724, %v740
  %v757 = vsel %vm247, %v741, -1e+30
  %v758 = vsel %vm248, %v742, -1e+30
  %v759 = vsel %vm249, %v743, -1e+30
  %v760 = vsel %vm250, %v744, -1e+30
  %v761 = vsel %vm251, %v745, -1e+30
  %v762 = vsel %vm252, %v746, -1e+30
  %v763 = vsel %vm253, %v747, -1e+30
  %v764 = vsel %vm254, %v748, -1e+30
  %v765 = vsel %vm255, %v749, -1e+30
  %v766 = vsel %vm256, %v750, -1e+30
  %v767 = vsel %vm257, %v751, -1e+30
  %v768 = vsel %vm258, %v752, -1e+30
  %v769 = vsel %vm259, %v753, -1e+30
  %v770 = vsel %vm260, %v754, -1e+30
  %v771 = vsel %vm261, %v755, -1e+30
  %v772 = vsel %vm262, %v756, -1e+30
  %773 = vmax.xlane.f32.xlu0 %v757
  %v774 = vpop.xlane.xlu0 %773
  %775 = vmax.xlane.f32.xlu0 %v758
  %v776 = vpop.xlane.xlu0 %775
  %777 = vmax.xlane.f32.xlu0 %v759
  %v778 = vpop.xlane.xlu0 %777
  %779 = vmax.xlane.f32.xlu0 %v760
  %v780 = vpop.xlane.xlu0 %779
  %781 = vmax.xlane.f32.xlu0 %v761
  %v782 = vpop.xlane.xlu0 %781
  %783 = vmax.xlane.f32.xlu0 %v762
  %v784 = vpop.xlane.xlu0 %783
  %785 = vmax.xlane.f32.xlu0 %v763
  %v786 = vpop.xlane.xlu0 %785
  %787 = vmax.xlane.f32.xlu0 %v764
  %v788 = vpop.xlane.xlu0 %787
  %789 = vmax.xlane.f32.xlu0 %v765
  %v790 = vpop.xlane.xlu0 %789
  %791 = vmax.xlane.f32.xlu0 %v766
  %v792 = vpop.xlane.xlu0 %791
  %793 = vmax.xlane.f32.xlu0 %v767
  %v794 = vpop.xlane.xlu0 %793
  %795 = vmax.xlane.f32.xlu0 %v768
  %v796 = vpop.xlane.xlu0 %795
  %797 = vmax.xlane.f32.xlu0 %v769
  %v798 = vpop.xlane.xlu0 %797
  %799 = vmax.xlane.f32.xlu0 %v770
  %v800 = vpop.xlane.xlu0 %799
  %801 = vmax.xlane.f32.xlu0 %v771
  %v802 = vpop.xlane.xlu0 %801
  %803 = vmax.xlane.f32.xlu0 %v772
  %v804 = vpop.xlane.xlu0 %803
  %v805 = vmax.f32 %v774, 0.0
  %v806 = vmax.f32 %v776, 0.0
  %v807 = vmax.f32 %v778, 0.0
  %v808 = vmax.f32 %v780, 0.0
  %v809 = vmax.f32 %v782, 0.0
  %v810 = vmax.f32 %v784, 0.0
  %v811 = vmax.f32 %v786, 0.0
  %v812 = vmax.f32 %v788, 0.0
  %v813 = vmax.f32 %v790, 0.0
  %v814 = vmax.f32 %v792, 0.0
  %v815 = vmax.f32 %v794, 0.0
  %v816 = vmax.f32 %v796, 0.0
  %v817 = vmax.f32 %v798, 0.0
  %v818 = vmax.f32 %v800, 0.0
  %v819 = vmax.f32 %v802, 0.0
  %v820 = vmax.f32 %v804, 0.0
  %v821 = vsub.f32 %v757, %v805
  %v822 = vsub.f32 %v758, %v806
  %v823 = vsub.f32 %v759, %v807
  %v824 = vsub.f32 %v760, %v808
  %v825 = vsub.f32 %v761, %v809
  %v826 = vsub.f32 %v762, %v810
  %v827 = vsub.f32 %v763, %v811
  %v828 = vsub.f32 %v764, %v812
  %v829 = vsub.f32 %v765, %v813
  %v830 = vsub.f32 %v766, %v814
  %v831 = vsub.f32 %v767, %v815
  %v832 = vsub.f32 %v768, %v816
  %v833 = vsub.f32 %v769, %v817
  %v834 = vsub.f32 %v770, %v818
  %v835 = vsub.f32 %v771, %v819
  %v836 = vsub.f32 %v772, %v820
  %v837 = vmul.f32 %v821, 1.442695
  %v838 = vpow.pop %v837
  %v839 = vmul.f32 %v822, 1.442695
  %v840 = vpow.pop %v839
  %v841 = vmul.f32 %v823, 1.442695
  %v842 = vpow.pop %v841
  %v843 = vmul.f32 %v824, 1.442695
  %v844 = vpow.pop %v843
  %v845 = vmul.f32 %v825, 1.442695
  %v846 = vpow.pop %v845
  %v847 = vmul.f32 %v826, 1.442695
  %v848 = vpow.pop %v847
  %v849 = vmul.f32 %v827, 1.442695
  %v850 = vpow.pop %v849
  %v851 = vmul.f32 %v828, 1.442695
  %v852 = vpow.pop %v851
  %v853 = vmul.f32 %v829, 1.442695
  %v854 = vpow.pop %v853
  %v855 = vmul.f32 %v830, 1.442695
  %v856 = vpow.pop %v855
  %v857 = vmul.f32 %v831, 1.442695
  %v858 = vpow.pop %v857
  %v859 = vmul.f32 %v832, 1.442695
  %v860 = vpow.pop %v859
  %v861 = vmul.f32 %v833, 1.442695
  %v862 = vpow.pop %v861
  %v863 = vmul.f32 %v834, 1.442695
  %v864 = vpow.pop %v863
  %v865 = vmul.f32 %v835, 1.442695
  %v866 = vpow.pop %v865
  %v867 = vmul.f32 %v836, 1.442695
  %v868 = vpow.pop %v867
  %v869 = vpack.c.bf16 %v840, %v838
  %v870 = vpack.c.bf16 %v844, %v842
  %v871 = vpack.c.bf16 %v848, %v846
  %v872 = vpack.c.bf16 %v852, %v850
  %v873 = vpack.c.bf16 %v856, %v854
  %v874 = vpack.c.bf16 %v860, %v858
  %v875 = vpack.c.bf16 %v864, %v862
  %v876 = vpack.c.bf16 %v868, %v866
  %s877 = scalar_lea.vmem %s1, 64
  %v878 = vld [vmem:[%s877] sm:$0xf]
  %v879 = vld [vmem:[%s877 + $0x4] sm:$0xf]
  %v880 = vld [vmem:[%s877 + $0x8] sm:$0xf]
  %v881 = vld [vmem:[%s877 + $0xc] sm:$0xf]
  %v882 = vld [vmem:[%s877 + $0x10] sm:$0xf]
  %v883 = vld [vmem:[%s877 + $0x14] sm:$0xf]
  %v884 = vld [vmem:[%s877 + $0x18] sm:$0xf]
  %v885 = vld [vmem:[%s877 + $0x1c] sm:$0xf]
  %v886 = vld [vmem:[%s877 + $0x20] sm:$0xf]
  %v887 = vld [vmem:[%s877 + $0x24] sm:$0xf]
  %v888 = vld [vmem:[%s877 + $0x28] sm:$0xf]
  %v889 = vld [vmem:[%s877 + $0x2c] sm:$0xf]
  %v890 = vld [vmem:[%s877 + $0x30] sm:$0xf]
  %v891 = vld [vmem:[%s877 + $0x34] sm:$0xf]
  %v892 = vld [vmem:[%s877 + $0x38] sm:$0xf]
  %v893 = vld [vmem:[%s877 + $0x3c] sm:$0xf]
  %v910 = vunpack.c.l.b16 %v878
  %v911 = vunpack.c.l.b16 %v879
  %v912 = vunpack.c.l.b16 %v880
  %v913 = vunpack.c.l.b16 %v881
  %v914 = vunpack.c.l.b16 %v882
  %v915 = vunpack.c.l.b16 %v883
  %v916 = vunpack.c.l.b16 %v884
  %v917 = vunpack.c.l.b16 %v885
  %v918 = vunpack.c.l.b16 %v886
  %v919 = vunpack.c.l.b16 %v887
  %v920 = vunpack.c.l.b16 %v888
  %v921 = vunpack.c.l.b16 %v889
  %v922 = vunpack.c.l.b16 %v890
  %v923 = vunpack.c.l.b16 %v891
  %v924 = vunpack.c.l.b16 %v892
  %v925 = vunpack.c.l.b16 %v893
  %v926 = vpack.c.b16 %v911, %v910
  %v927 = vpack.c.b16 %v913, %v912
  %v928 = vpack.c.b16 %v915, %v914
  %v929 = vpack.c.b16 %v917, %v916
  %v930 = vpack.c.b16 %v919, %v918
  %v931 = vpack.c.b16 %v921, %v920
  %v932 = vpack.c.b16 %v923, %v922
  %v933 = vpack.c.b16 %v925, %v924
  %942 = vmatpush.bf16.msra.mxu0 %v933
  %943 = vmatpush.bf16.msra.mxu0 %v932
  %944 = vmatpush.bf16.msra.mxu0 %v931
  %945 = vmatpush.bf16.msra.mxu0 %v930
  %946 = vmatpush.bf16.msra.mxu0 %v929
  %947 = vmatpush.bf16.msra.mxu0 %v928
  %948 = vmatpush.bf16.msra.mxu0 %v927
  %949 = vmatpush.bf16.msra.mxu0 %v926
  %950 = vmatmul.bf16.gmra.mxu0 %v869
  %v951 = vpop.f32.mrf.mxu0
  %v952 = vadd.f32 0.0, %v951
  %v953 = vpop.f32.mrf.mxu0
  %v954 = vadd.f32 0.0, %v953
  %955 = vmatmul.bf16.gmra.mxu0 %v870
  %v956 = vpop.f32.mrf.mxu0
  %v957 = vadd.f32 0.0, %v956
  %v958 = vpop.f32.mrf.mxu0
  %v959 = vadd.f32 0.0, %v958
  %960 = vmatmul.bf16.gmra.mxu0 %v871
  %v961 = vpop.f32.mrf.mxu0
  %v962 = vadd.f32 0.0, %v961
  %v963 = vpop.f32.mrf.mxu0
  %v964 = vadd.f32 0.0, %v963
  %965 = vmatmul.bf16.gmra.mxu0 %v872
  %v966 = vpop.f32.mrf.mxu0
  %v967 = vadd.f32 0.0, %v966
  %v968 = vpop.f32.mrf.mxu0
  %v969 = vadd.f32 0.0, %v968
  %970 = vmatmul.bf16.gmra.mxu0 %v873
  %v971 = vpop.f32.mrf.mxu0
  %v972 = vadd.f32 0.0, %v971
  %v973 = vpop.f32.mrf.mxu0
  %v974 = vadd.f32 0.0, %v973
  %975 = vmatmul.bf16.gmra.mxu0 %v874
  %v976 = vpop.f32.mrf.mxu0
  %v977 = vadd.f32 0.0, %v976
  %v978 = vpop.f32.mrf.mxu0
  %v979 = vadd.f32 0.0, %v978
  %980 = vmatmul.bf16.gmra.mxu0 %v875
  %v981 = vpop.f32.mrf.mxu0
  %v982 = vadd.f32 0.0, %v981
  %v983 = vpop.f32.mrf.mxu0
  %v984 = vadd.f32 0.0, %v983
  %985 = vmatmul.bf16.gmra.mxu0 %v876
  %v986 = vpop.f32.mrf.mxu0
  %v987 = vadd.f32 0.0, %v986
  %v988 = vpop.f32.mrf.mxu0
  %v989 = vadd.f32 0.0, %v988
  %990 = vdwg.mxu0
  %vm991 = vcmp.gt.f32.partialorder %v952, 0.0
  %vm992 = vcmp.gt.f32.partialorder %v954, 0.0
  %vm993 = vcmp.gt.f32.partialorder %v957, 0.0
  %vm994 = vcmp.gt.f32.partialorder %v959, 0.0
  %vm995 = vcmp.gt.f32.partialorder %v962, 0.0
  %vm996 = vcmp.gt.f32.partialorder %v964, 0.0
  %vm997 = vcmp.gt.f32.partialorder %v967, 0.0
  %vm998 = vcmp.gt.f32.partialorder %v969, 0.0
  %vm999 = vcmp.gt.f32.partialorder %v972, 0.0
  %vm1000 = vcmp.gt.f32.partialorder %v974, 0.0
  %vm1001 = vcmp.gt.f32.partialorder %v977, 0.0
  %vm1002 = vcmp.gt.f32.partialorder %v979, 0.0
  %vm1003 = vcmp.gt.f32.partialorder %v982, 0.0
  %vm1004 = vcmp.gt.f32.partialorder %v984, 0.0
  %vm1005 = vcmp.gt.f32.partialorder %v987, 0.0
  %vm1006 = vcmp.gt.f32.partialorder %v989, 0.0
  %v1007 = vsel %vm991, %v952, 1.0
  %v1008 = vsel %vm992, %v954, 1.0
  %v1009 = vsel %vm993, %v957, 1.0
  %v1010 = vsel %vm994, %v959, 1.0
  %v1011 = vsel %vm995, %v962, 1.0
  %v1012 = vsel %vm996, %v964, 1.0
  %v1013 = vsel %vm997, %v967, 1.0
  %v1014 = vsel %vm998, %v969, 1.0
  %v1015 = vsel %vm999, %v972, 1.0
  %v1016 = vsel %vm1000, %v974, 1.0
  %v1017 = vsel %vm1001, %v977, 1.0
  %v1018 = vsel %vm1002, %v979, 1.0
  %v1019 = vsel %vm1003, %v982, 1.0
  %v1020 = vsel %vm1004, %v984, 1.0
  %v1021 = vsel %vm1005, %v987, 1.0
  %v1022 = vsel %vm1006, %v989, 1.0
  %v1023 = vrcp.pop %v1007
  %v1024 = vrcp.pop %v1008
  %v1025 = vrcp.pop %v1009
  %v1026 = vrcp.pop %v1010
  %v1027 = vrcp.pop %v1011
  %v1028 = vrcp.pop %v1012
  %v1029 = vrcp.pop %v1013
  %v1030 = vrcp.pop %v1014
  %v1031 = vrcp.pop %v1015
  %v1032 = vrcp.pop %v1016
  %v1033 = vrcp.pop %v1017
  %v1034 = vrcp.pop %v1018
  %v1035 = vrcp.pop %v1019
  %v1036 = vrcp.pop %v1020
  %v1037 = vrcp.pop %v1021
  %v1038 = vrcp.pop %v1022
  %1040 = vset.pattern.permute.xlu0 64
  %1041 = vperm.xlu0 %1040, %v1023
  %v1042 = vpop.permute.xlu0 %1041
  %1045 = vset.pattern.permute.xlu0 64
  %1046 = vperm.xlu0 %1045, %v1024
  %v1047 = vpop.permute.xlu0 %1046
  %1050 = vset.pattern.permute.xlu0 64
  %1051 = vperm.xlu0 %1050, %v1025
  %v1052 = vpop.permute.xlu0 %1051
  %1055 = vset.pattern.permute.xlu0 64
  %1056 = vperm.xlu0 %1055, %v1026
  %v1057 = vpop.permute.xlu0 %1056
  %1060 = vset.pattern.permute.xlu0 64
  %1061 = vperm.xlu0 %1060, %v1027
  %v1062 = vpop.permute.xlu0 %1061
  %1065 = vset.pattern.permute.xlu0 64
  %1066 = vperm.xlu0 %1065, %v1028
  %v1067 = vpop.permute.xlu0 %1066
  %1070 = vset.pattern.permute.xlu0 64
  %1071 = vperm.xlu0 %1070, %v1029
  %v1072 = vpop.permute.xlu0 %1071
  %1075 = vset.pattern.permute.xlu0 64
  %1076 = vperm.xlu0 %1075, %v1030
  %v1077 = vpop.permute.xlu0 %1076
  %1080 = vset.pattern.permute.xlu0 64
  %1081 = vperm.xlu0 %1080, %v1031
  %v1082 = vpop.permute.xlu0 %1081
  %1085 = vset.pattern.permute.xlu0 64
  %1086 = vperm.xlu0 %1085, %v1032
  %v1087 = vpop.permute.xlu0 %1086
  %1090 = vset.pattern.permute.xlu0 64
  %1091 = vperm.xlu0 %1090, %v1033
  %v1092 = vpop.permute.xlu0 %1091
  %1095 = vset.pattern.permute.xlu0 64
  %1096 = vperm.xlu0 %1095, %v1034
  %v1097 = vpop.permute.xlu0 %1096
  %1100 = vset.pattern.permute.xlu0 64
  %1101 = vperm.xlu0 %1100, %v1035
  %v1102 = vpop.permute.xlu0 %1101
  %1105 = vset.pattern.permute.xlu0 64
  %1106 = vperm.xlu0 %1105, %v1036
  %v1107 = vpop.permute.xlu0 %1106
  %1110 = vset.pattern.permute.xlu0 64
  %1111 = vperm.xlu0 %1110, %v1037
  %v1112 = vpop.permute.xlu0 %1111
  %1115 = vset.pattern.permute.xlu0 64
  %1116 = vperm.xlu0 %1115, %v1038
  %v1117 = vpop.permute.xlu0 %1116
  %v1119 = vmul.f32 %v952, %v1042
  %v1120 = vmul.f32 %v954, %v1047
  %v1121 = vmul.f32 %v957, %v1052
  %v1122 = vmul.f32 %v959, %v1057
  %v1123 = vmul.f32 %v962, %v1062
  %v1124 = vmul.f32 %v964, %v1067
  %v1125 = vmul.f32 %v967, %v1072
  %v1126 = vmul.f32 %v969, %v1077
  %v1127 = vmul.f32 %v972, %v1082
  %v1128 = vmul.f32 %v974, %v1087
  %v1129 = vmul.f32 %v977, %v1092
  %v1130 = vmul.f32 %v979, %v1097
  %v1131 = vmul.f32 %v982, %v1102
  %v1132 = vmul.f32 %v984, %v1107
  %v1133 = vmul.f32 %v987, %v1112
  %v1134 = vmul.f32 %v989, %v1117
  %v1135 = vadd.f32 %v624, %v1119
  %v1136 = vadd.f32 %v625, %v1120
  %v1137 = vadd.f32 %v626, %v1121
  %v1138 = vadd.f32 %v627, %v1122
  %v1139 = vadd.f32 %v628, %v1123
  %v1140 = vadd.f32 %v629, %v1124
  %v1141 = vadd.f32 %v630, %v1125
  %v1142 = vadd.f32 %v631, %v1126
  %v1143 = vadd.f32 %v632, %v1127
  %v1144 = vadd.f32 %v633, %v1128
  %v1145 = vadd.f32 %v634, %v1129
  %v1146 = vadd.f32 %v635, %v1130
  %v1147 = vadd.f32 %v636, %v1131
  %v1148 = vadd.f32 %v637, %v1132
  %v1149 = vadd.f32 %v638, %v1133
  %v1150 = vadd.f32 %v639, %v1134
  %v1151 = vmul.f32 %v1135, 0.5
  %v1152 = vmul.f32 %v1136, 0.5
  %v1153 = vmul.f32 %v1137, 0.5
  %v1154 = vmul.f32 %v1138, 0.5
  %v1155 = vmul.f32 %v1139, 0.5
  %v1156 = vmul.f32 %v1140, 0.5
  %v1157 = vmul.f32 %v1141, 0.5
  %v1158 = vmul.f32 %v1142, 0.5
  %v1159 = vmul.f32 %v1143, 0.5
  %v1160 = vmul.f32 %v1144, 0.5
  %v1161 = vmul.f32 %v1145, 0.5
  %v1162 = vmul.f32 %v1146, 0.5
  %v1163 = vmul.f32 %v1147, 0.5
  %v1164 = vmul.f32 %v1148, 0.5
  %v1165 = vmul.f32 %v1149, 0.5
  %v1166 = vmul.f32 %v1150, 0.5
  %v1167 = vld [vmem:[%s4] sm:$0x1]
  %v1169 = vperm.slane %v1167, 0
  %v1171 = vadd.f32 %v1151, %v1169
  %v1172 = vadd.f32 %v1152, %v1169
  %v1173 = vadd.f32 %v1153, %v1169
  %v1174 = vadd.f32 %v1154, %v1169
  %v1175 = vadd.f32 %v1155, %v1169
  %v1176 = vadd.f32 %v1156, %v1169
  %v1177 = vadd.f32 %v1157, %v1169
  %v1178 = vadd.f32 %v1158, %v1169
  %v1179 = vadd.f32 %v1159, %v1169
  %v1180 = vadd.f32 %v1160, %v1169
  %v1181 = vadd.f32 %v1161, %v1169
  %v1182 = vadd.f32 %v1162, %v1169
  %v1183 = vadd.f32 %v1163, %v1169
  %v1184 = vadd.f32 %v1164, %v1169
  %v1185 = vadd.f32 %v1165, %v1169
  %v1186 = vadd.f32 %v1166, %v1169
  %v1187 = vpack.c.bf16 %v1172, %v1171
  %v1188 = vpack.c.bf16 %v1174, %v1173
  %v1189 = vpack.c.bf16 %v1176, %v1175
  %v1190 = vpack.c.bf16 %v1178, %v1177
  %v1191 = vpack.c.bf16 %v1180, %v1179
  %v1192 = vpack.c.bf16 %v1182, %v1181
  %v1193 = vpack.c.bf16 %v1184, %v1183
  %v1194 = vpack.c.bf16 %v1186, %v1185
  %v1195 = vld [vmem:[%s5] sm:$0xf]
  %v1196 = vld [vmem:[%s5 + $0x4] sm:$0xf]
  %v1197 = vld [vmem:[%s5 + $0x8] sm:$0xf]
  %v1198 = vld [vmem:[%s5 + $0xc] sm:$0xf]
  %v1199 = vld [vmem:[%s5 + $0x10] sm:$0xf]
  %v1200 = vld [vmem:[%s5 + $0x14] sm:$0xf]
  %v1201 = vld [vmem:[%s5 + $0x18] sm:$0xf]
  %v1202 = vld [vmem:[%s5 + $0x1c] sm:$0xf]
  %v1203 = vld [vmem:[%s6] sm:$0x1]
  %v1205 = vperm.slane %v1203, 0
  %v1215 = vunpack.c.l.b16 %v1195
  %v1216 = vunpack.c.l.b16 %v1196
  %v1217 = vunpack.c.l.b16 %v1197
  %v1218 = vunpack.c.l.b16 %v1198
  %v1219 = vunpack.c.l.b16 %v1199
  %v1220 = vunpack.c.l.b16 %v1200
  %v1221 = vunpack.c.l.b16 %v1201
  %v1222 = vunpack.c.l.b16 %v1202
  %v1223 = vpack.c.b16 %v1216, %v1215
  %v1224 = vpack.c.b16 %v1218, %v1217
  %v1225 = vpack.c.b16 %v1220, %v1219
  %v1226 = vpack.c.b16 %v1222, %v1221
  %vm1231 = vcmask 523264
  %v1233 = vsel %vm1231, %v1187, 0
  %v1236 = vsel %vm1231, %v1188, 0
  %v1239 = vsel %vm1231, %v1189, 0
  %v1242 = vsel %vm1231, %v1190, 0
  %v1245 = vsel %vm1231, %v1191, 0
  %v1248 = vsel %vm1231, %v1192, 0
  %v1251 = vsel %vm1231, %v1193, 0
  %v1254 = vsel %vm1231, %v1194, 0
  %1256 = vmatpush.bf16.msra.mxu0 0
  %1257 = vmatpush.bf16.msra.mxu0 0
  %1258 = vmatpush.bf16.msra.mxu0 0
  %1259 = vmatpush.bf16.msra.mxu0 0
  %1260 = vmatpush.bf16.msra.mxu0 %v1226
  %1261 = vmatpush.bf16.msra.mxu0 %v1225
  %1262 = vmatpush.bf16.msra.mxu0 %v1224
  %1263 = vmatpush.bf16.msra.mxu0 %v1223
  %1264 = vmatmul.bf16.gmra.mxu0 %v1233
  %v1265 = vpop.f32.mrf.mxu0
  %v1266 = vadd.f32 %v1205, %v1265
  %v1267 = vpop.f32.mrf.mxu0
  %v1268 = vadd.f32 %v1205, %v1267
  %1269 = vmatmul.bf16.gmra.mxu0 %v1236
  %v1270 = vpop.f32.mrf.mxu0
  %v1271 = vadd.f32 %v1205, %v1270
  %v1272 = vpop.f32.mrf.mxu0
  %v1273 = vadd.f32 %v1205, %v1272
  %1274 = vmatmul.bf16.gmra.mxu0 %v1239
  %v1275 = vpop.f32.mrf.mxu0
  %v1276 = vadd.f32 %v1205, %v1275
  %v1277 = vpop.f32.mrf.mxu0
  %v1278 = vadd.f32 %v1205, %v1277
  %1279 = vmatmul.bf16.gmra.mxu0 %v1242
  %v1280 = vpop.f32.mrf.mxu0
  %v1281 = vadd.f32 %v1205, %v1280
  %v1282 = vpop.f32.mrf.mxu0
  %v1283 = vadd.f32 %v1205, %v1282
  %1284 = vmatmul.bf16.gmra.mxu0 %v1245
  %v1285 = vpop.f32.mrf.mxu0
  %v1286 = vadd.f32 %v1205, %v1285
  %v1287 = vpop.f32.mrf.mxu0
  %v1288 = vadd.f32 %v1205, %v1287
  %1289 = vmatmul.bf16.gmra.mxu0 %v1248
  %v1290 = vpop.f32.mrf.mxu0
  %v1291 = vadd.f32 %v1205, %v1290
  %v1292 = vpop.f32.mrf.mxu0
  %v1293 = vadd.f32 %v1205, %v1292
  %1294 = vmatmul.bf16.gmra.mxu0 %v1251
  %v1295 = vpop.f32.mrf.mxu0
  %v1296 = vadd.f32 %v1205, %v1295
  %v1297 = vpop.f32.mrf.mxu0
  %v1298 = vadd.f32 %v1205, %v1297
  %1299 = vmatmul.bf16.gmra.mxu0 %v1254
  %v1300 = vpop.f32.mrf.mxu0
  %v1301 = vadd.f32 %v1205, %v1300
  %v1302 = vpop.f32.mrf.mxu0
  %v1303 = vadd.f32 %v1205, %v1302
  %1304 = vdwg.mxu0
  %v1305 = vmax.f32 %v1266, 0.0
  %v1306 = vmax.f32 %v1268, 0.0
  %v1307 = vmax.f32 %v1271, 0.0
  %v1308 = vmax.f32 %v1273, 0.0
  %v1309 = vmax.f32 %v1276, 0.0
  %v1310 = vmax.f32 %v1278, 0.0
  %v1311 = vmax.f32 %v1281, 0.0
  %v1312 = vmax.f32 %v1283, 0.0
  %v1313 = vmax.f32 %v1286, 0.0
  %v1314 = vmax.f32 %v1288, 0.0
  %v1315 = vmax.f32 %v1291, 0.0
  %v1316 = vmax.f32 %v1293, 0.0
  %v1317 = vmax.f32 %v1296, 0.0
  %v1318 = vmax.f32 %v1298, 0.0
  %v1319 = vmax.f32 %v1301, 0.0
  %v1320 = vmax.f32 %v1303, 0.0
  %v1321 = vpack.c.bf16 %v1306, %v1305
  %v1322 = vpack.c.bf16 %v1308, %v1307
  %v1323 = vpack.c.bf16 %v1310, %v1309
  %v1324 = vpack.c.bf16 %v1312, %v1311
  %v1325 = vpack.c.bf16 %v1314, %v1313
  %v1326 = vpack.c.bf16 %v1316, %v1315
  %v1327 = vpack.c.bf16 %v1318, %v1317
  %v1328 = vpack.c.bf16 %v1320, %v1319
  %v1329 = vld [vmem:[%s7] sm:$0xf]
  %v1330 = vld [vmem:[%s7 + $0x4] sm:$0xf]
  %v1331 = vld [vmem:[%s7 + $0x8] sm:$0xf]
  %v1332 = vld [vmem:[%s7 + $0xc] sm:$0xf]
  %v1333 = vld [vmem:[%s7 + $0x10] sm:$0xf]
  %v1334 = vld [vmem:[%s7 + $0x14] sm:$0xf]
  %v1335 = vld [vmem:[%s7 + $0x18] sm:$0xf]
  %v1336 = vld [vmem:[%s7 + $0x1c] sm:$0xf]
  %v1337 = vld [vmem:[%s8] sm:$0x1]
  %v1339 = vperm.slane %v1337, 0
  %v1349 = vunpack.c.l.b16 %v1329
  %v1350 = vunpack.c.l.b16 %v1330
  %v1351 = vunpack.c.l.b16 %v1331
  %v1352 = vunpack.c.l.b16 %v1332
  %v1353 = vunpack.c.l.b16 %v1333
  %v1354 = vunpack.c.l.b16 %v1334
  %v1355 = vunpack.c.l.b16 %v1335
  %v1356 = vunpack.c.l.b16 %v1336
  %v1357 = vpack.c.b16 %v1350, %v1349
  %v1358 = vpack.c.b16 %v1352, %v1351
  %v1359 = vpack.c.b16 %v1354, %v1353
  %v1360 = vpack.c.b16 %v1356, %v1355
  %v1366 = vsel %vm1231, %v1321, 0
  %v1369 = vsel %vm1231, %v1322, 0
  %v1372 = vsel %vm1231, %v1323, 0
  %v1375 = vsel %vm1231, %v1324, 0
  %v1378 = vsel %vm1231, %v1325, 0
  %v1381 = vsel %vm1231, %v1326, 0
  %v1384 = vsel %vm1231, %v1327, 0
  %v1387 = vsel %vm1231, %v1328, 0
  %1389 = vmatpush.bf16.msra.mxu0 0
  %1390 = vmatpush.bf16.msra.mxu0 0
  %1391 = vmatpush.bf16.msra.mxu0 0
  %1392 = vmatpush.bf16.msra.mxu0 0
  %1393 = vmatpush.bf16.msra.mxu0 %v1360
  %1394 = vmatpush.bf16.msra.mxu0 %v1359
  %1395 = vmatpush.bf16.msra.mxu0 %v1358
  %1396 = vmatpush.bf16.msra.mxu0 %v1357
  %1397 = vmatmul.bf16.gmra.mxu0 %v1366
  %v1398 = vpop.f32.mrf.mxu0
  %v1399 = vadd.f32 %v1339, %v1398
  %v1400 = vpop.f32.mrf.mxu0
  %v1401 = vadd.f32 %v1339, %v1400
  %1402 = vmatmul.bf16.gmra.mxu0 %v1369
  %v1403 = vpop.f32.mrf.mxu0
  %v1404 = vadd.f32 %v1339, %v1403
  %v1405 = vpop.f32.mrf.mxu0
  %v1406 = vadd.f32 %v1339, %v1405
  %1407 = vmatmul.bf16.gmra.mxu0 %v1372
  %v1408 = vpop.f32.mrf.mxu0
  %v1409 = vadd.f32 %v1339, %v1408
  %v1410 = vpop.f32.mrf.mxu0
  %v1411 = vadd.f32 %v1339, %v1410
  %1412 = vmatmul.bf16.gmra.mxu0 %v1375
  %v1413 = vpop.f32.mrf.mxu0
  %v1414 = vadd.f32 %v1339, %v1413
  %v1415 = vpop.f32.mrf.mxu0
  %v1416 = vadd.f32 %v1339, %v1415
  %1417 = vmatmul.bf16.gmra.mxu0 %v1378
  %v1418 = vpop.f32.mrf.mxu0
  %v1419 = vadd.f32 %v1339, %v1418
  %v1420 = vpop.f32.mrf.mxu0
  %v1421 = vadd.f32 %v1339, %v1420
  %1422 = vmatmul.bf16.gmra.mxu0 %v1381
  %v1423 = vpop.f32.mrf.mxu0
  %v1424 = vadd.f32 %v1339, %v1423
  %v1425 = vpop.f32.mrf.mxu0
  %v1426 = vadd.f32 %v1339, %v1425
  %1427 = vmatmul.bf16.gmra.mxu0 %v1384
  %v1428 = vpop.f32.mrf.mxu0
  %v1429 = vadd.f32 %v1339, %v1428
  %v1430 = vpop.f32.mrf.mxu0
  %v1431 = vadd.f32 %v1339, %v1430
  %1432 = vmatmul.bf16.gmra.mxu0 %v1387
  %v1433 = vpop.f32.mrf.mxu0
  %v1434 = vadd.f32 %v1339, %v1433
  %v1435 = vpop.f32.mrf.mxu0
  %v1436 = vadd.f32 %v1339, %v1435
  %1437 = vdwg.mxu0
  %1438 = vst [vmem:[%s9] sm:$0xff] %v1399
  %1439 = vst [vmem:[%s9 + $0x8] sm:$0xff] %v1401
  %1440 = vst [vmem:[%s9 + $0x10] sm:$0xff] %v1404
  %1441 = vst [vmem:[%s9 + $0x18] sm:$0xff] %v1406
  %1442 = vst [vmem:[%s9 + $0x20] sm:$0xff] %v1409
  %1443 = vst [vmem:[%s9 + $0x28] sm:$0xff] %v1411
  %1444 = vst [vmem:[%s9 + $0x30] sm:$0xff] %v1414
  %1445 = vst [vmem:[%s9 + $0x38] sm:$0xff] %v1416
  %1446 = vst [vmem:[%s9 + $0x40] sm:$0xff] %v1419
  %1447 = vst [vmem:[%s9 + $0x48] sm:$0xff] %v1421
  %1448 = vst [vmem:[%s9 + $0x50] sm:$0xff] %v1424
  %1449 = vst [vmem:[%s9 + $0x58] sm:$0xff] %v1426
  %1450 = vst [vmem:[%s9 + $0x60] sm:$0xff] %v1429
  %1451 = vst [vmem:[%s9 + $0x68] sm:$0xff] %v1431
  %1452 = vst [vmem:[%s9 + $0x70] sm:$0xff] %v1434
  %1453 = vst [vmem:[%s9 + $0x78] sm:$0xff] %v1436
  // Predicated region
  $region38: #{orbit_gnn_forward.3} parent=0 // pred_check
    _
  $region39: #{orbit_gnn_forward.3} parent=0 // pred_check_branch
    %1455 = sbr.rel (0) target = $region41
  $region40: #{orbit_gnn_forward.3} parent=0 // pred_region
    _
  $region41: #{orbit_gnn_forward.3} parent=0 // pred_fallthru
    _
  // Predicated region
  $region42: #{orbit_gnn_forward.3} parent=0 // pred_check
    _
  $region43: #{orbit_gnn_forward.3} parent=0 // pred_check_branch
    %1457 = sbr.rel (0) target = $region45
  $region44: #{orbit_gnn_forward.3} parent=0 // pred_region
    _
  $region45: #{orbit_gnn_forward.3} parent=0 // pred_fallthru
    _

</llo_original>
